<compile_context>
chip_gen: v7x
topology: tpu7x:2x2x1
jax: 0.10.0
libtpu: 0.0.40
codegen_flags: <defaults>
</compile_context>

<pallas_src>
import numpy as np
import jax
import jax.numpy as jnp
from jax.experimental import pallas as pl
from jax.experimental.pallas import tpu as pltpu

LANE = 128


def _round_up(x, m):
    return ((x + m - 1) // m) * m


def _pad2(a, rows, cols):
    a = jnp.asarray(a, jnp.float32)
    return jnp.pad(a, ((0, rows - a.shape[0]), (0, cols - a.shape[1])))


def temporal_edge_conv_kernel(
    x_ref,        # [N_pad, Cp] all node features (VMEM-resident, for gather)
    xres_ref,     # [tn, Cp]    node tile of x (residual)
    ea_ref,       # [te, Ecp]   edge-attr tile
    ts_ref,       # [te, 1]     timestamps tile
    row_ref,      # [te, 1]     int32 source node ids
    col_ref,      # [1, te]     int32 target node ids (sentinel N_pad for padding)
    w1_ref, b1_ref, w2_ref, b2_ref,     # edge encoder (Linear, Linear)
    wt_ref, bt_ref,                     # time attention (Linear(1, C))
    wn1a_ref, wn1b_ref, bn1_ref,        # node encoder layer 1 (split: x-half / edge-half)
    wn2_ref, bn2_ref,                   # node encoder layer 2
    out_ref,      # [tn, Cp]    accumulator, resident across the edge-tile axis
):
    i = pl.program_id(0)          # node-tile index ("parallel")
    j = pl.program_id(1)          # edge-tile index ("arbitrary", reduction)

    tn = out_ref.shape[0]
    te = ea_ref.shape[0]
    n_pad = x_ref.shape[0]

    # ---- residual init at the first edge tile ----
    @pl.when(j == 0)
    def _():
        out_ref[...] = xres_ref[...]

    # ---- edge encoder MLP: Linear -> ReLU -> Linear (Dropout = identity, eval) ----
    h = jnp.dot(ea_ref[...], w1_ref[...], preferred_element_type=jnp.float32) + b1_ref[...]
    h = jnp.maximum(h, 0.0)
    ef = jnp.dot(h, w2_ref[...], preferred_element_type=jnp.float32) + b2_ref[...]     # [te, Cp]

    # ---- time attention: K=1 linear done on the VPU (broadcast) + sigmoid on EUP ----
    tw = jax.nn.sigmoid(ts_ref[...] * wt_ref[...] + bt_ref[...])                        # [te, Cp]
    ef = ef * tw

    # ---- gather x[row] via one-hot matmul (f32, exact) ----
    # TODO(synk): for very large N, switch to a scalar-prefetch / manual-DMA row gather.
    gsel = (jax.lax.broadcasted_iota(jnp.int32, (te, n_pad), 1) == row_ref[...])
    x_src = jnp.dot(gsel.astype(jnp.float32), x_ref[...],
                    preferred_element_type=jnp.float32)                                 # [te, Cp]

    # ---- node encoder MLP on concat([x_src, ef]); weight split avoids the concat ----
    z = (jnp.dot(x_src, wn1a_ref[...], preferred_element_type=jnp.float32)
         + jnp.dot(ef, wn1b_ref[...], preferred_element_type=jnp.float32)
         + bn1_ref[...])
    z = jnp.maximum(z, 0.0)
    msg = jnp.dot(z, wn2_ref[...], preferred_element_type=jnp.float32) + bn2_ref[...]   # [te, Cp]

    # ---- scatter-add messages into the current node tile ----
    node_ids = jax.lax.broadcasted_iota(jnp.int32, (tn, te), 0) + i * tn
    ssel = (node_ids == col_ref[...]).astype(jnp.float32)                               # [tn, te]
    out_ref[...] += jnp.dot(ssel, msg, preferred_element_type=jnp.float32)


def temporal_edge_conv(x, edge_index, edge_attr, timestamps, params, *, tn=128, te=128):
    """x:[N,C] f32, edge_index:[2,E] int, edge_attr:[E,Ec], timestamps:[E]."""
    N, C = x.shape
    E, Ec = edge_attr.shape
    H = 2 * Ec

    assert te % LANE == 0, "edge tile must be a multiple of 128 (lane dim of the scatter mask)"
    assert tn % 8 == 0, "node tile must be a multiple of 8 (f32 sublane)"

    Cp, Ecp, Hp = _round_up(C, LANE), _round_up(Ec, LANE), _round_up(H, LANE)
    N_pad, E_pad = _round_up(N, tn), _round_up(E, te)

    # ---- zero-pad everything to lane/sublane-friendly shapes (math stays exact) ----
    x_p = _pad2(x, N_pad, Cp)
    ea_p = _pad2(edge_attr, E_pad, Ecp)
    ts_p = jnp.pad(jnp.asarray(timestamps, jnp.float32).reshape(E, 1),
                   ((0, E_pad - E), (0, 0)))
    row_p = jnp.pad(edge_index[0].astype(jnp.int32), (0, E_pad - E)).reshape(E_pad, 1)
    # padded edges target the out-of-range sentinel N_pad -> never matched by the scatter mask
    col_p = jnp.pad(edge_index[1].astype(jnp.int32), (0, E_pad - E),
                    constant_values=N_pad).reshape(1, E_pad)

    weights = (
        _pad2(params["w1"], Ecp, Hp), _pad2(params["b1"], 1, Hp),
        _pad2(params["w2"], Hp, Cp), _pad2(params["b2"], 1, Cp),
        _pad2(params["wt"], 1, Cp), _pad2(params["bt"], 1, Cp),
        _pad2(params["wn1a"], Cp, Cp), _pad2(params["wn1b"], Cp, Cp), _pad2(params["bn1"], 1, Cp),
        _pad2(params["wn2"], Cp, Cp), _pad2(params["bn2"], 1, Cp),
    )

    gi, gj = N_pad // tn, E_pad // te
    idx_full = lambda i, j: (0, 0)      # loaded once, VMEM-resident across the grid
    idx_edge = lambda i, j: (j, 0)

    in_specs = [
        pl.BlockSpec((N_pad, Cp), idx_full),            # x (full, resident for gather)
        pl.BlockSpec((tn, Cp), lambda i, j: (i, 0)),    # x node tile (residual)
        pl.BlockSpec((te, Ecp), idx_edge),              # edge_attr tile
        pl.BlockSpec((te, 1), idx_edge),                # timestamps tile
        pl.BlockSpec((te, 1), idx_edge),                # row tile
        pl.BlockSpec((1, te), lambda i, j: (0, j)),     # col tile
    ] + [pl.BlockSpec(w.shape, idx_full) for w in weights]

    flops = gi * gj * 2 * te * (Ecp * Hp + Hp * Cp + N_pad * Cp + 3 * Cp * Cp + tn * Cp)
    bytes_accessed = 4 * (int(x_p.size) + int(ea_p.size) + int(ts_p.size) + int(row_p.size)
                          + int(col_p.size) + sum(int(w.size) for w in weights) + N_pad * Cp)

    out_p = pl.pallas_call(
        temporal_edge_conv_kernel,
        out_shape=jax.ShapeDtypeStruct((N_pad, Cp), jnp.float32),
        grid_spec=pltpu.PrefetchScalarGridSpec(
            num_scalar_prefetch=0,
            grid=(gi, gj),
            in_specs=in_specs,
            out_specs=pl.BlockSpec((tn, Cp), lambda i, j: (i, 0)),
        ),
        compiler_params=pltpu.CompilerParams(
            dimension_semantics=("parallel", "arbitrary"),
            vmem_limit_bytes=32 * 1024 * 1024,
        ),
        cost_estimate=pl.CostEstimate(
            flops=int(flops),
            transcendentals=int(gi * gj * te * Cp),
            bytes_accessed=int(bytes_accessed)),
    )(x_p, x_p, ea_p, ts_p, row_p, col_p, *weights)

    return out_p[:N, :C]


def init_params(key, in_channels, edge_channels):
    """Deterministic init mimicking torch.nn.Linear default (U(-k, k), k=1/sqrt(fan_in))."""
    def linear(key, fan_in, fan_out):
        kw, kb = jax.random.split(key)
        k = 1.0 / np.sqrt(fan_in)
        w = jax.random.uniform(kw, (fan_in, fan_out), jnp.float32, -k, k)
        b = jax.random.uniform(kb, (1, fan_out), jnp.float32, -k, k)
        return w, b

    keys = jax.random.split(key, 5)
    C, Ec = in_channels, edge_channels
    w1, b1 = linear(keys[0], Ec, 2 * Ec)           # edge_encoder[0]
    w2, b2 = linear(keys[1], 2 * Ec, C)            # edge_encoder[2]
    wn1, bn1 = linear(keys[2], 2 * C, C)           # node_encoder[0]
    wn2, bn2 = linear(keys[3], C, C)               # node_encoder[2]
    wt, bt = linear(keys[4], 1, C)                 # time_attention[0]
    return {
        "w1": w1, "b1": b1, "w2": w2, "b2": b2,
        "wt": wt, "bt": bt,
        "wn1a": wn1[:C, :], "wn1b": wn1[C:, :], "bn1": bn1,
        "wn2": wn2, "bn2": bn2,
    }


def reference(x, edge_index, edge_attr, timestamps, p):
    """Pure-JAX reference of the PyTorch forward (eval mode)."""
    ef = jnp.maximum(edge_attr @ p["w1"] + p["b1"], 0.0) @ p["w2"] + p["b2"]
    tw = jax.nn.sigmoid(timestamps.reshape(-1, 1) @ p["wt"] + p["bt"])
    ef = ef * tw
    row, col = edge_index
    x_src = x[row]
    comb = jnp.concatenate([x_src, ef], axis=1)
    wn1 = jnp.concatenate([p["wn1a"], p["wn1b"]], axis=0)
    msg = jnp.maximum(comb @ wn1 + p["bn1"], 0.0) @ p["wn2"] + p["bn2"]
    out = jnp.zeros_like(x).at[col].add(msg)
    return out + x


if __name__ == "__main__":
    # small, module-consistent shapes; big enough to exercise a 2x3 grid
    N = 200         # num_nodes  -> N_pad = 256 -> 2 node tiles of 128
    C = 32          # in_channels
    Ec = 8          # edge_channels
    E = 300         # num_edges  -> E_pad = 384 -> 3 edge tiles of 128

    key = jax.random.PRNGKey(0)
    k_x, k_ea, k_ts, k_ei, k_p = jax.random.split(key, 5)

    x = jax.random.normal(k_x, (N, C), jnp.float32)
    edge_attr = jax.random.normal(k_ea, (E, Ec), jnp.float32)
    timestamps = jax.random.uniform(k_ts, (E,), jnp.float32)
    edge_index = jax.random.randint(k_ei, (2, E), 0, N, jnp.int32)

    params = init_params(k_p, C, Ec)

    out = temporal_edge_conv(x, edge_index, edge_attr, timestamps, params, tn=128, te=128)
    out = jax.block_until_ready(out)

    ref = jax.block_until_ready(reference(x, edge_index, edge_attr, timestamps, params))
    np.testing.assert_allclose(np.asarray(out), np.asarray(ref), rtol=1e-4, atol=1e-4)

    print("KERNEL_OK")
</pallas_src>

<mosaic_0001>
module attributes {stable_mosaic.version = 11 : i64} {
  func.func @temporal_edge_conv_kernel(%arg0: i32, %arg1: i32, %arg2: memref<256x128xf32, #tpu.memory_space<vmem>>, %arg3: memref<128x128xf32, #tpu.memory_space<vmem>>, %arg4: memref<128x128xf32, #tpu.memory_space<vmem>>, %arg5: memref<128x1xf32, #tpu.memory_space<vmem>>, %arg6: memref<128x1xi32, #tpu.memory_space<vmem>>, %arg7: memref<1x128xi32, #tpu.memory_space<vmem>>, %arg8: memref<128x128xf32, #tpu.memory_space<vmem>>, %arg9: memref<1x128xf32, #tpu.memory_space<vmem>>, %arg10: memref<128x128xf32, #tpu.memory_space<vmem>>, %arg11: memref<1x128xf32, #tpu.memory_space<vmem>>, %arg12: memref<1x128xf32, #tpu.memory_space<vmem>>, %arg13: memref<1x128xf32, #tpu.memory_space<vmem>>, %arg14: memref<128x128xf32, #tpu.memory_space<vmem>>, %arg15: memref<128x128xf32, #tpu.memory_space<vmem>>, %arg16: memref<1x128xf32, #tpu.memory_space<vmem>>, %arg17: memref<128x128xf32, #tpu.memory_space<vmem>>, %arg18: memref<1x128xf32, #tpu.memory_space<vmem>>, %arg19: memref<128x128xf32, #tpu.memory_space<vmem>>) attributes {dimension_semantics = [#tpu.dimension_semantics<parallel>, #tpu.dimension_semantics<arbitrary>], iteration_bounds = array<i64: 2, 3>, scalar_prefetch = 0 : i64, scratch_operands = 0 : i64, tpu.core_type = #tpu.core_type<tc>, window_params = [{pipeline_mode = #tpu.pipeline_mode<synchronous>, transform_indices = @transform_0, window_bounds = array<i64: 256, 128>}, {transform_indices = @transform_1, window_bounds = array<i64: 128, 128>}, {transform_indices = @transform_2, window_bounds = array<i64: 128, 128>}, {transform_indices = @transform_3, window_bounds = array<i64: 128, 1>}, {transform_indices = @transform_4, window_bounds = array<i64: 128, 1>}, {transform_indices = @transform_5, window_bounds = array<i64: 1, 128>}, {pipeline_mode = #tpu.pipeline_mode<synchronous>, transform_indices = @transform_6, window_bounds = array<i64: 128, 128>}, {pipeline_mode = #tpu.pipeline_mode<synchronous>, transform_indices = @transform_7, window_bounds = array<i64: 1, 128>}, {pipeline_mode = #tpu.pipeline_mode<synchronous>, transform_indices = @transform_8, window_bounds = array<i64: 128, 128>}, {pipeline_mode = #tpu.pipeline_mode<synchronous>, transform_indices = @transform_9, window_bounds = array<i64: 1, 128>}, {pipeline_mode = #tpu.pipeline_mode<synchronous>, transform_indices = @transform_10, window_bounds = array<i64: 1, 128>}, {pipeline_mode = #tpu.pipeline_mode<synchronous>, transform_indices = @transform_11, window_bounds = array<i64: 1, 128>}, {pipeline_mode = #tpu.pipeline_mode<synchronous>, transform_indices = @transform_12, window_bounds = array<i64: 128, 128>}, {pipeline_mode = #tpu.pipeline_mode<synchronous>, transform_indices = @transform_13, window_bounds = array<i64: 128, 128>}, {pipeline_mode = #tpu.pipeline_mode<synchronous>, transform_indices = @transform_14, window_bounds = array<i64: 1, 128>}, {pipeline_mode = #tpu.pipeline_mode<synchronous>, transform_indices = @transform_15, window_bounds = array<i64: 128, 128>}, {pipeline_mode = #tpu.pipeline_mode<synchronous>, transform_indices = @transform_16, window_bounds = array<i64: 1, 128>}, {transform_indices = @transform_17, window_bounds = array<i64: 128, 128>}]} {
    %c0_i32 = arith.constant 0 : i32
    %0 = arith.cmpi eq, %arg1, %c0_i32 : i32
    %1 = arith.extui %0 : i1 to i32
    %c0_i32_0 = arith.constant 0 : i32
    %2 = arith.cmpi ne, %1, %c0_i32_0 : i32
    scf.if %2 {
      %c0_45 = arith.constant 0 : index
      %c0_46 = arith.constant 0 : index
      %66 = vector.load %arg3[%c0_45, %c0_46] : memref<128x128xf32, #tpu.memory_space<vmem>>, vector<128x128xf32>
      %c0_47 = arith.constant 0 : index
      %c0_48 = arith.constant 0 : index
      %67 = vector.load %arg19[%c0_47, %c0_48] : memref<128x128xf32, #tpu.memory_space<vmem>>, vector<128x128xf32>
      tpu.vector_store %arg19[%c0_47, %c0_48], %66 {strides = array<i32>} : memref<128x128xf32, #tpu.memory_space<vmem>>, vector<128x128xf32>,
    } else {
    }
    %c0 = arith.constant 0 : index
    %c0_1 = arith.constant 0 : index
    %3 = vector.load %arg4[%c0, %c0_1] : memref<128x128xf32, #tpu.memory_space<vmem>>, vector<128x128xf32>
    %c0_2 = arith.constant 0 : index
    %c0_3 = arith.constant 0 : index
    %4 = vector.load %arg8[%c0_2, %c0_3] : memref<128x128xf32, #tpu.memory_space<vmem>>, vector<128x128xf32>
    %cst = arith.constant dense<0.000000e+00> : vector<128x128xf32>
    %5 = tpu.matmul %3, %4, %cst {dimension_numbers = #tpu.dot_dimension_numbers<[1], [0], [0], [1], [0, 0, 1, 1], [], []>} : vector<128x128xf32>, vector<128x128xf32>, vector<128x128xf32> -> vector<128x128xf32>
    %c0_4 = arith.constant 0 : index
    %c0_5 = arith.constant 0 : index
    %6 = vector.load %arg9[%c0_4, %c0_5] : memref<1x128xf32, #tpu.memory_space<vmem>>, vector<1x128xf32>
    %7 = vector.broadcast %6 : vector<1x128xf32> to vector<128x128xf32>
    %8 = arith.addf %5, %7 : vector<128x128xf32>
    %cst_6 = arith.constant 0.000000e+00 : f32
    %9 = vector.broadcast %cst_6 : f32 to vector<128x128xf32>
    %10 = arith.maximumf %8, %9 : vector<128x128xf32>
    %c0_7 = arith.constant 0 : index
    %c0_8 = arith.constant 0 : index
    %11 = vector.load %arg10[%c0_7, %c0_8] : memref<128x128xf32, #tpu.memory_space<vmem>>, vector<128x128xf32>
    %cst_9 = arith.constant dense<0.000000e+00> : vector<128x128xf32>
    %12 = tpu.matmul %10, %11, %cst_9 {dimension_numbers = #tpu.dot_dimension_numbers<[1], [0], [0], [1], [0, 0, 1, 1], [], []>} : vector<128x128xf32>, vector<128x128xf32>, vector<128x128xf32> -> vector<128x128xf32>
    %c0_10 = arith.constant 0 : index
    %c0_11 = arith.constant 0 : index
    %13 = vector.load %arg11[%c0_10, %c0_11] : memref<1x128xf32, #tpu.memory_space<vmem>>, vector<1x128xf32>
    %14 = vector.broadcast %13 : vector<1x128xf32> to vector<128x128xf32>
    %15 = arith.addf %12, %14 : vector<128x128xf32>
    %c0_12 = arith.constant 0 : index
    %c0_13 = arith.constant 0 : index
    %16 = vector.load %arg5[%c0_12, %c0_13] : memref<128x1xf32, #tpu.memory_space<vmem>>, vector<128x1xf32>
    %c0_14 = arith.constant 0 : index
    %c0_15 = arith.constant 0 : index
    %17 = vector.load %arg12[%c0_14, %c0_15] : memref<1x128xf32, #tpu.memory_space<vmem>>, vector<1x128xf32>
    %18 = vector.broadcast %16 : vector<128x1xf32> to vector<128x128xf32>
    %19 = vector.broadcast %17 : vector<1x128xf32> to vector<128x128xf32>
    %20 = arith.mulf %18, %19 : vector<128x128xf32>
    %c0_16 = arith.constant 0 : index
    %c0_17 = arith.constant 0 : index
    %21 = vector.load %arg13[%c0_16, %c0_17] : memref<1x128xf32, #tpu.memory_space<vmem>>, vector<1x128xf32>
    %22 = vector.broadcast %21 : vector<1x128xf32> to vector<128x128xf32>
    %23 = arith.addf %20, %22 : vector<128x128xf32>
    %24 = arith.negf %23 : vector<128x128xf32>
    %25 = math.exp %24 : vector<128x128xf32>
    %cst_18 = arith.constant 1.000000e+00 : f32
    %26 = vector.broadcast %cst_18 : f32 to vector<128x128xf32>
    %27 = arith.addf %26, %25 : vector<128x128xf32>
    %28 = arith.divf %26, %27 : vector<128x128xf32>
    %29 = arith.mulf %15, %28 : vector<128x128xf32>
    %30 = tpu.iota {dimensions = array<i32: 1>} : vector<128x256xi32>
    %c0_19 = arith.constant 0 : index
    %c0_20 = arith.constant 0 : index
    %31 = vector.load %arg6[%c0_19, %c0_20] : memref<128x1xi32, #tpu.memory_space<vmem>>, vector<128x1xi32>
    %32 = vector.broadcast %31 : vector<128x1xi32> to vector<128x256xi32>
    %33 = arith.cmpi eq, %30, %32 : vector<128x256xi32>
    %34 = arith.extui %33 : vector<128x256xi1> to vector<128x256xi32>
    %35 = arith.sitofp %34 : vector<128x256xi32> to vector<128x256xf32>
    %c0_21 = arith.constant 0 : index
    %c0_22 = arith.constant 0 : index
    %36 = vector.load %arg2[%c0_21, %c0_22] : memref<256x128xf32, #tpu.memory_space<vmem>>, vector<256x128xf32>
    %cst_23 = arith.constant dense<0.000000e+00> : vector<128x128xf32>
    %37 = tpu.matmul %35, %36, %cst_23 {dimension_numbers = #tpu.dot_dimension_numbers<[1], [0], [0], [1], [0, 0, 1, 1], [], []>} : vector<128x256xf32>, vector<256x128xf32>, vector<128x128xf32> -> vector<128x128xf32>
    %c0_24 = arith.constant 0 : index
    %c0_25 = arith.constant 0 : index
    %38 = vector.load %arg14[%c0_24, %c0_25] : memref<128x128xf32, #tpu.memory_space<vmem>>, vector<128x128xf32>
    %cst_26 = arith.constant dense<0.000000e+00> : vector<128x128xf32>
    %39 = tpu.matmul %37, %38, %cst_26 {dimension_numbers = #tpu.dot_dimension_numbers<[1], [0], [0], [1], [0, 0, 1, 1], [], []>} : vector<128x128xf32>, vector<128x128xf32>, vector<128x128xf32> -> vector<128x128xf32>
    %c0_27 = arith.constant 0 : index
    %c0_28 = arith.constant 0 : index
    %40 = vector.load %arg15[%c0_27, %c0_28] : memref<128x128xf32, #tpu.memory_space<vmem>>, vector<128x128xf32>
    %cst_29 = arith.constant dense<0.000000e+00> : vector<128x128xf32>
    %41 = tpu.matmul %29, %40, %cst_29 {dimension_numbers = #tpu.dot_dimension_numbers<[1], [0], [0], [1], [0, 0, 1, 1], [], []>} : vector<128x128xf32>, vector<128x128xf32>, vector<128x128xf32> -> vector<128x128xf32>
    %42 = arith.addf %39, %41 : vector<128x128xf32>
    %c0_30 = arith.constant 0 : index
    %c0_31 = arith.constant 0 : index
    %43 = vector.load %arg16[%c0_30, %c0_31] : memref<1x128xf32, #tpu.memory_space<vmem>>, vector<1x128xf32>
    %44 = vector.broadcast %43 : vector<1x128xf32> to vector<128x128xf32>
    %45 = arith.addf %42, %44 : vector<128x128xf32>
    %cst_32 = arith.constant 0.000000e+00 : f32
    %46 = vector.broadcast %cst_32 : f32 to vector<128x128xf32>
    %47 = arith.maximumf %45, %46 : vector<128x128xf32>
    %c0_33 = arith.constant 0 : index
    %c0_34 = arith.constant 0 : index
    %48 = vector.load %arg17[%c0_33, %c0_34] : memref<128x128xf32, #tpu.memory_space<vmem>>, vector<128x128xf32>
    %cst_35 = arith.constant dense<0.000000e+00> : vector<128x128xf32>
    %49 = tpu.matmul %47, %48, %cst_35 {dimension_numbers = #tpu.dot_dimension_numbers<[1], [0], [0], [1], [0, 0, 1, 1], [], []>} : vector<128x128xf32>, vector<128x128xf32>, vector<128x128xf32> -> vector<128x128xf32>
    %c0_36 = arith.constant 0 : index
    %c0_37 = arith.constant 0 : index
    %50 = vector.load %arg18[%c0_36, %c0_37] : memref<1x128xf32, #tpu.memory_space<vmem>>, vector<1x128xf32>
    %51 = vector.broadcast %50 : vector<1x128xf32> to vector<128x128xf32>
    %52 = arith.addf %49, %51 : vector<128x128xf32>
    %53 = tpu.iota {dimensions = array<i32: 0>} : vector<128x128xi32>
    %c128_i32 = arith.constant 128 : i32
    %54 = arith.muli %arg0, %c128_i32 : i32
    %55 = vector.broadcast %54 : i32 to vector<128x128xi32>
    %56 = arith.addi %53, %55 : vector<128x128xi32>
    %c0_38 = arith.constant 0 : index
    %c0_39 = arith.constant 0 : index
    %57 = vector.load %arg7[%c0_38, %c0_39] : memref<1x128xi32, #tpu.memory_space<vmem>>, vector<1x128xi32>
    %58 = vector.broadcast %57 : vector<1x128xi32> to vector<128x128xi32>
    %59 = arith.cmpi eq, %56, %58 : vector<128x128xi32>
    %60 = arith.extui %59 : vector<128x128xi1> to vector<128x128xi32>
    %61 = arith.sitofp %60 : vector<128x128xi32> to vector<128x128xf32>
    %c0_40 = arith.constant 0 : index
    %c0_41 = arith.constant 0 : index
    %62 = vector.load %arg19[%c0_40, %c0_41] : memref<128x128xf32, #tpu.memory_space<vmem>>, vector<128x128xf32>
    %cst_42 = arith.constant dense<0.000000e+00> : vector<128x128xf32>
    %63 = tpu.matmul %61, %52, %cst_42 {dimension_numbers = #tpu.dot_dimension_numbers<[1], [0], [0], [1], [0, 0, 1, 1], [], []>} : vector<128x128xf32>, vector<128x128xf32>, vector<128x128xf32> -> vector<128x128xf32>
    %64 = arith.addf %62, %63 : vector<128x128xf32>
    %c0_43 = arith.constant 0 : index
    %c0_44 = arith.constant 0 : index
    %65 = vector.load %arg19[%c0_43, %c0_44] : memref<128x128xf32, #tpu.memory_space<vmem>>, vector<128x128xf32>
    tpu.vector_store %arg19[%c0_43, %c0_44], %64 {strides = array<i32>} : memref<128x128xf32, #tpu.memory_space<vmem>>, vector<128x128xf32>,
    return
  }
  func.func @transform_0(%arg0: i32, %arg1: i32) -> (i32, i32) {
    %c0_i32 = arith.constant 0 : i32
    %c0_i32_0 = arith.constant 0 : i32
    %c0_i32_1 = arith.constant 0 : i32
    return %c0_i32, %c0_i32_0 : i32, i32
  }
  func.func @transform_1(%arg0: i32, %arg1: i32) -> (i32, i32) {
    %c0_i32 = arith.constant 0 : i32
    %c0_i32_0 = arith.constant 0 : i32
    return %arg0, %c0_i32 : i32, i32
  }
  func.func @transform_2(%arg0: i32, %arg1: i32) -> (i32, i32) {
    %c0_i32 = arith.constant 0 : i32
    %c0_i32_0 = arith.constant 0 : i32
    return %arg1, %c0_i32 : i32, i32
  }
  func.func @transform_3(%arg0: i32, %arg1: i32) -> (i32, i32) {
    %c0_i32 = arith.constant 0 : i32
    %c0_i32_0 = arith.constant 0 : i32
    return %arg1, %c0_i32 : i32, i32
  }
  func.func @transform_4(%arg0: i32, %arg1: i32) -> (i32, i32) {
    %c0_i32 = arith.constant 0 : i32
    %c0_i32_0 = arith.constant 0 : i32
    return %arg1, %c0_i32 : i32, i32
  }
  func.func @transform_5(%arg0: i32, %arg1: i32) -> (i32, i32) {
    %c0_i32 = arith.constant 0 : i32
    %c0_i32_0 = arith.constant 0 : i32
    return %c0_i32, %arg1 : i32, i32
  }
  func.func @transform_6(%arg0: i32, %arg1: i32) -> (i32, i32) {
    %c0_i32 = arith.constant 0 : i32
    %c0_i32_0 = arith.constant 0 : i32
    %c0_i32_1 = arith.constant 0 : i32
    return %c0_i32, %c0_i32_0 : i32, i32
  }
  func.func @transform_7(%arg0: i32, %arg1: i32) -> (i32, i32) {
    %c0_i32 = arith.constant 0 : i32
    %c0_i32_0 = arith.constant 0 : i32
    %c0_i32_1 = arith.constant 0 : i32
    return %c0_i32, %c0_i32_0 : i32, i32
  }
  func.func @transform_8(%arg0: i32, %arg1: i32) -> (i32, i32) {
    %c0_i32 = arith.constant 0 : i32
    %c0_i32_0 = arith.constant 0 : i32
    %c0_i32_1 = arith.constant 0 : i32
    return %c0_i32, %c0_i32_0 : i32, i32
  }
  func.func @transform_9(%arg0: i32, %arg1: i32) -> (i32, i32) {
    %c0_i32 = arith.constant 0 : i32
    %c0_i32_0 = arith.constant 0 : i32
    %c0_i32_1 = arith.constant 0 : i32
    return %c0_i32, %c0_i32_0 : i32, i32
  }
  func.func @transform_10(%arg0: i32, %arg1: i32) -> (i32, i32) {
    %c0_i32 = arith.constant 0 : i32
    %c0_i32_0 = arith.constant 0 : i32
    %c0_i32_1 = arith.constant 0 : i32
    return %c0_i32, %c0_i32_0 : i32, i32
  }
  func.func @transform_11(%arg0: i32, %arg1: i32) -> (i32, i32) {
    %c0_i32 = arith.constant 0 : i32
    %c0_i32_0 = arith.constant 0 : i32
    %c0_i32_1 = arith.constant 0 : i32
    return %c0_i32, %c0_i32_0 : i32, i32
  }
  func.func @transform_12(%arg0: i32, %arg1: i32) -> (i32, i32) {
    %c0_i32 = arith.constant 0 : i32
    %c0_i32_0 = arith.constant 0 : i32
    %c0_i32_1 = arith.constant 0 : i32
    return %c0_i32, %c0_i32_0 : i32, i32
  }
  func.func @transform_13(%arg0: i32, %arg1: i32) -> (i32, i32) {
    %c0_i32 = arith.constant 0 : i32
    %c0_i32_0 = arith.constant 0 : i32
    %c0_i32_1 = arith.constant 0 : i32
    return %c0_i32, %c0_i32_0 : i32, i32
  }
  func.func @transform_14(%arg0: i32, %arg1: i32) -> (i32, i32) {
    %c0_i32 = arith.constant 0 : i32
    %c0_i32_0 = arith.constant 0 : i32
    %c0_i32_1 = arith.constant 0 : i32
    return %c0_i32, %c0_i32_0 : i32, i32
  }
  func.func @transform_15(%arg0: i32, %arg1: i32) -> (i32, i32) {
    %c0_i32 = arith.constant 0 : i32
    %c0_i32_0 = arith.constant 0 : i32
    %c0_i32_1 = arith.constant 0 : i32
    return %c0_i32, %c0_i32_0 : i32, i32
  }
  func.func @transform_16(%arg0: i32, %arg1: i32) -> (i32, i32) {
    %c0_i32 = arith.constant 0 : i32
    %c0_i32_0 = arith.constant 0 : i32
    %c0_i32_1 = arith.constant 0 : i32
    return %c0_i32, %c0_i32_0 : i32, i32
  }
  func.func @transform_17(%arg0: i32, %arg1: i32) -> (i32, i32) {
    %c0_i32 = arith.constant 0 : i32
    %c0_i32_0 = arith.constant 0 : i32
    return %arg0, %c0_i32 : i32, i32
  }
}

</mosaic_0001>

<llo_original>
// kernel: tpu_custom_call.1
$region0: #{tpu_custom_call.1}
  #allocation0 [shape = 'u32[]', space=smem, size = 0x4, offset = 0x4, fixed_abs, tag = 'smem constant byte address 0x4 - core index']
  #allocation1 [shape = 'u32[144,128]{1,0:T(1,128)}', space=vmem, size = 0x12000, scoped, tag = 'internal scratch']
  %s0 = inlined_call_operand.vmem [shape: f32[256,128], index: 0, kind: input, shape index: {}]
  %s1 = inlined_call_operand.hbm [shape: f32[256,128], index: 1, kind: input, shape index: {}]
  %s2 = inlined_call_operand.vmem [shape: f32[384,128], index: 2, kind: input, shape index: {}]
  %s3 = inlined_call_operand.vmem [shape: f32[384,1], index: 3, kind: input, shape index: {}]
  %s4 = inlined_call_operand.vmem [shape: s32[384,1], index: 4, kind: input, shape index: {}]
  %s5 = inlined_call_operand.vmem [shape: s32[1,384], index: 5, kind: input, shape index: {}]
  %s6 = inlined_call_operand.vmem [shape: f32[128,128], index: 6, kind: input, shape index: {}]
  %s7 = inlined_call_operand.vmem [shape: f32[1,128], index: 7, kind: input, shape index: {}]
  %s8 = inlined_call_operand.hbm [shape: f32[128,128], index: 8, kind: input, shape index: {}]
  %s9 = inlined_call_operand.vmem [shape: f32[1,128], index: 9, kind: input, shape index: {}]
  %s10 = inlined_call_operand.vmem [shape: f32[1,128], index: 10, kind: input, shape index: {}]
  %s11 = inlined_call_operand.vmem [shape: f32[1,128], index: 11, kind: input, shape index: {}]
  %s12 = inlined_call_operand.hbm [shape: f32[128,128], index: 12, kind: input, shape index: {}]
  %s13 = inlined_call_operand.hbm [shape: f32[128,128], index: 13, kind: input, shape index: {}]
  %s14 = inlined_call_operand.vmem [shape: f32[1,128], index: 14, kind: input, shape index: {}]
  %s15 = inlined_call_operand.hbm [shape: f32[128,128], index: 15, kind: input, shape index: {}]
  %s16 = inlined_call_operand.vmem [shape: f32[1,128], index: 16, kind: input, shape index: {}]
  %s17 = inlined_call_operand.hbm [shape: f32[256,128], index: 17, kind: output, shape index: {}]
  %s18 = sld [smem:[#allocation0]]
  $region125: #{tpu_custom_call.1} parent=0
    _
  %s20 = ssub.s32 1, %s18
  %s21 = scalar_select 0, %s20, %s18
  $region1: #{tpu_custom_call.1} parent=0
    #allocation2 [shape = 'u8[131072]{0}', space=vmem, size = 0x20000, scoped, tag = 'input window, operand 1']
    #allocation3 [shape = 's32[2]{0}', space=sflag, size = 0x8, scoped, tag = 'scoped memory for tpu_custom_call.1']
    #allocation4 [shape = 's32[2]{0}', space=sflag, size = 0x8, scoped, tag = 'scoped memory for tpu_custom_call.1']
    #allocation5 [shape = 'u8[65536]{0}', space=vmem, size = 0x10000, scoped, tag = 'input window, operand 8, single buffered']
    #allocation6 [shape = 's32[1]{0}', space=sflag, size = 0x4, scoped, tag = 'scoped memory for tpu_custom_call.1']
    #allocation7 [shape = 'u8[65536]{0}', space=vmem, size = 0x10000, scoped, tag = 'input window, operand 12, single buffered']
    #allocation8 [shape = 'u8[65536]{0}', space=vmem, size = 0x10000, scoped, tag = 'input window, operand 13, single buffered']
    #allocation9 [shape = 's32[1]{0}', space=sflag, size = 0x4, scoped, tag = 'scoped memory for tpu_custom_call.1']
    #allocation10 [shape = 'u8[65536]{0}', space=vmem, size = 0x10000, scoped, tag = 'input window, operand 15, single buffered']
    #allocation11 [shape = 'u8[131072]{0}', space=vmem, size = 0x20000, scoped, tag = 'output window, operand 0']
    %22 = vsyncpa [#allocation3], 0
    %s23 = scalar_lea.sflag [#allocation3], 1
    %24 = vsyncpa %s23, 0
    %25 = vsyncpa [#allocation6], 0
    %26 = vsyncpa [#allocation9], 0
    %27 = vsyncpa [#allocation4], 0
    %s28 = scalar_lea.sflag [#allocation4], 1
    %29 = vsyncpa %s28, 0
    loop: start=0, step=1, limit=8
    $region2: #{tpu_custom_call.1} parent=1 // loop_pre_header
      _
    $region3: #{tpu_custom_call.1} parent=1 // loop_header
      %s31 = sphi 0, %s35
      %p32 = scmp.ge.s32.totalorder %s31, 8
      %s38 = sphi 0, %s50
      %s39 = sphi 0, %s46
      %s40 = sphi 0, %s38
      %s41 = sphi 0, %s39
      %s42 = sphi 0, %s40
      %s43 = sphi 0, %s41
      %s51 = sphi 0, %s51
      %s53 = sphi 0, %s51
      %s54 = sphi 0, %s53
      %s68 = sphi 0, %s54
      %s74 = sphi 0, %s76
      %s77 = sphi 0, %s74
      %s78 = sphi 0, %s77
      %s94 = sphi 0, %s78
      %s100 = sphi 0, %s102
      %s103 = sphi 0, %s100
      %s104 = sphi 0, %s103
      %s120 = sphi 0, %s104
      %s126 = sphi 0, %s128
      %s129 = sphi 0, %s126
      %s130 = sphi 0, %s129
      %s146 = sphi 0, %s130
      %s152 = sphi 0, %s154
      %s155 = sphi 0, %s152
      %s156 = sphi 0, %s155
      %s172 = sphi 0, %s156
      %s178 = sphi 0, %s180
      %s181 = sphi 0, %s178
      %s182 = sphi 0, %s181
      %s198 = sphi 0, %s182
      %s202 = sphi 0, %s202
      %s204 = sphi 0, %s202
      %s205 = sphi 0, %s204
      %s219 = sphi 0, %s205
      %s223 = sphi 0, %s223
      %s225 = sphi 0, %s223
      %s226 = sphi 0, %s225
      %s240 = sphi 0, %s226
      %s244 = sphi 0, %s244
      %s246 = sphi 0, %s244
      %s247 = sphi 0, %s246
      %s261 = sphi 0, %s247
      %s265 = sphi 0, %s265
      %s267 = sphi 0, %s265
      %s268 = sphi 0, %s267
      %s282 = sphi 0, %s268
      %s286 = sphi 0, %s286
      %s288 = sphi 0, %s286
      %s289 = sphi 0, %s288
      %s303 = sphi 0, %s289
      %s307 = sphi 0, %s307
      %s309 = sphi 0, %s307
      %s310 = sphi 0, %s309
      %s324 = sphi 0, %s310
      %s328 = sphi 0, %s328
      %s330 = sphi 0, %s328
      %s331 = sphi 0, %s330
      %s345 = sphi 0, %s331
      %s349 = sphi 0, %s349
      %s351 = sphi 0, %s349
      %s352 = sphi 0, %s351
      %s366 = sphi 0, %s352
      %s370 = sphi 0, %s370
      %s372 = sphi 0, %s370
      %s373 = sphi 0, %s372
      %s387 = sphi 0, %s373
      %s391 = sphi 0, %s391
      %s393 = sphi 0, %s391
      %s394 = sphi 0, %s393
      %s408 = sphi 0, %s394
      %s412 = sphi 0, %s412
      %s414 = sphi 0, %s412
      %s415 = sphi 0, %s414
      %s429 = sphi 0, %s415
      %s435 = sphi 0, %s437
      %s438 = sphi 0, %s435
      %s439 = sphi 0, %s438
      %s455 = sphi 0, %s439
    $region4: #{tpu_custom_call.1} parent=1 // loop_header_branch
      %34 = sbr.rel (%p32) target = $region8
    $region5: #{tpu_custom_call.1} parent=1 // loop_body
      %s36 = ssub.s32 %s31, 1
      %s37 = ssub.s32 %s31, 2
      %s44 = sadd.s32 1, %s39
      %p45 = scmp.ge.s32.totalorder %s44, 3
      %s46 = scalar_select %p45, 0, %s44
      %s47 = sadd.s32 1, %s38
      %s48 = scalar_select %p45, %s47, %s38
      %p49 = scmp.ge.s32.totalorder %s48, 2
      %s50 = scalar_select %p49, 0, %s48
      %s52 = sadd.s32 %s51, 1
      %p55 = scmp.eq.s32.totalorder %s31, 5
      %p56 = scmp.ne.s32.totalorder %s51, %s53
      %p57 = scmp.eq.s32.totalorder %s31, 0
      %p58 = por %p56, %p57
      %p59 = scmp.ne.s32.totalorder %s51, %s53
      %p60 = scmp.eq.s32.totalorder %s36, 5
      %p61 = por %p59, %p60
      %p62 = scmp.ne.s32.totalorder %s53, %s54
      %p63 = scmp.eq.s32.totalorder %s36, 0
      %p64 = por %p62, %p63
      %p65 = scmp.ne.s32.totalorder %s53, %s54
      %p66 = scmp.eq.s32.totalorder %s37, 5
      %p67 = por %p65, %p66
      %p69 = scmp.ne.s32.totalorder %s54, %s68
      %p70 = scmp.eq.s32.totalorder %s37, 0
      %p71 = por %p69, %p70
      %s72 = ssub.s32 %s38, %s50
      %p73 = scmp.eq.s32.totalorder %s72, 0
      %s75 = sadd.s32 %s74, 1
      %s76 = scalar_select %p73, %s74, %s75
      %p79 = pneg %p73
      %p80 = scmp.eq.s32.totalorder %s31, 5
      %p81 = por %p79, %p80
      %p82 = scmp.ne.s32.totalorder %s74, %s77
      %p83 = scmp.eq.s32.totalorder %s31, 0
      %p84 = por %p82, %p83
      %p85 = scmp.ne.s32.totalorder %s74, %s77
      %p86 = scmp.eq.s32.totalorder %s36, 5
      %p87 = por %p85, %p86
      %p88 = scmp.ne.s32.totalorder %s77, %s78
      %p89 = scmp.eq.s32.totalorder %s36, 0
      %p90 = por %p88, %p89
      %p91 = scmp.ne.s32.totalorder %s77, %s78
      %p92 = scmp.eq.s32.totalorder %s37, 5
      %p93 = por %p91, %p92
      %p95 = scmp.ne.s32.totalorder %s78, %s94
      %p96 = scmp.eq.s32.totalorder %s37, 0
      %p97 = por %p95, %p96
      %s98 = ssub.s32 %s39, %s46
      %p99 = scmp.eq.s32.totalorder %s98, 0
      %s101 = sadd.s32 %s100, 1
      %s102 = scalar_select %p99, %s100, %s101
      %p105 = pneg %p99
      %p106 = scmp.eq.s32.totalorder %s31, 5
      %p107 = por %p105, %p106
      %p108 = scmp.ne.s32.totalorder %s100, %s103
      %p109 = scmp.eq.s32.totalorder %s31, 0
      %p110 = por %p108, %p109
      %p111 = scmp.ne.s32.totalorder %s100, %s103
      %p112 = scmp.eq.s32.totalorder %s36, 5
      %p113 = por %p111, %p112
      %p114 = scmp.ne.s32.totalorder %s103, %s104
      %p115 = scmp.eq.s32.totalorder %s36, 0
      %p116 = por %p114, %p115
      %p117 = scmp.ne.s32.totalorder %s103, %s104
      %p118 = scmp.eq.s32.totalorder %s37, 5
      %p119 = por %p117, %p118
      %p121 = scmp.ne.s32.totalorder %s104, %s120
      %p122 = scmp.eq.s32.totalorder %s37, 0
      %p123 = por %p121, %p122
      %s124 = ssub.s32 %s39, %s46
      %p125 = scmp.eq.s32.totalorder %s124, 0
      %s127 = sadd.s32 %s126, 1
      %s128 = scalar_select %p125, %s126, %s127
      %p131 = pneg %p125
      %p132 = scmp.eq.s32.totalorder %s31, 5
      %p133 = por %p131, %p132
      %p134 = scmp.ne.s32.totalorder %s126, %s129
      %p135 = scmp.eq.s32.totalorder %s31, 0
      %p136 = por %p134, %p135
      %p137 = scmp.ne.s32.totalorder %s126, %s129
      %p138 = scmp.eq.s32.totalorder %s36, 5
      %p139 = por %p137, %p138
      %p140 = scmp.ne.s32.totalorder %s129, %s130
      %p141 = scmp.eq.s32.totalorder %s36, 0
      %p142 = por %p140, %p141
      %p143 = scmp.ne.s32.totalorder %s129, %s130
      %p144 = scmp.eq.s32.totalorder %s37, 5
      %p145 = por %p143, %p144
      %p147 = scmp.ne.s32.totalorder %s130, %s146
      %p148 = scmp.eq.s32.totalorder %s37, 0
      %p149 = por %p147, %p148
      %s150 = ssub.s32 %s39, %s46
      %p151 = scmp.eq.s32.totalorder %s150, 0
      %s153 = sadd.s32 %s152, 1
      %s154 = scalar_select %p151, %s152, %s153
      %p157 = pneg %p151
      %p158 = scmp.eq.s32.totalorder %s31, 5
      %p159 = por %p157, %p158
      %p160 = scmp.ne.s32.totalorder %s152, %s155
      %p161 = scmp.eq.s32.totalorder %s31, 0
      %p162 = por %p160, %p161
      %p163 = scmp.ne.s32.totalorder %s152, %s155
      %p164 = scmp.eq.s32.totalorder %s36, 5
      %p165 = por %p163, %p164
      %p166 = scmp.ne.s32.totalorder %s155, %s156
      %p167 = scmp.eq.s32.totalorder %s36, 0
      %p168 = por %p166, %p167
      %p169 = scmp.ne.s32.totalorder %s155, %s156
      %p170 = scmp.eq.s32.totalorder %s37, 5
      %p171 = por %p169, %p170
      %p173 = scmp.ne.s32.totalorder %s156, %s172
      %p174 = scmp.eq.s32.totalorder %s37, 0
      %p175 = por %p173, %p174
      %s176 = ssub.s32 %s39, %s46
      %p177 = scmp.eq.s32.totalorder %s176, 0
      %s179 = sadd.s32 %s178, 1
      %s180 = scalar_select %p177, %s178, %s179
      %p183 = pneg %p177
      %p184 = scmp.eq.s32.totalorder %s31, 5
      %p185 = por %p183, %p184
      %p186 = scmp.ne.s32.totalorder %s178, %s181
      %p187 = scmp.eq.s32.totalorder %s31, 0
      %p188 = por %p186, %p187
      %p189 = scmp.ne.s32.totalorder %s178, %s181
      %p190 = scmp.eq.s32.totalorder %s36, 5
      %p191 = por %p189, %p190
      %p192 = scmp.ne.s32.totalorder %s181, %s182
      %p193 = scmp.eq.s32.totalorder %s36, 0
      %p194 = por %p192, %p193
      %p195 = scmp.ne.s32.totalorder %s181, %s182
      %p196 = scmp.eq.s32.totalorder %s37, 5
      %p197 = por %p195, %p196
      %p199 = scmp.ne.s32.totalorder %s182, %s198
      %p200 = scmp.eq.s32.totalorder %s37, 0
      %p201 = por %p199, %p200
      %s203 = sadd.s32 %s202, 1
      %p206 = scmp.eq.s32.totalorder %s31, 5
      %p207 = scmp.ne.s32.totalorder %s202, %s204
      %p208 = scmp.eq.s32.totalorder %s31, 0
      %p209 = por %p207, %p208
      %p210 = scmp.ne.s32.totalorder %s202, %s204
      %p211 = scmp.eq.s32.totalorder %s36, 5
      %p212 = por %p210, %p211
      %p213 = scmp.ne.s32.totalorder %s204, %s205
      %p214 = scmp.eq.s32.totalorder %s36, 0
      %p215 = por %p213, %p214
      %p216 = scmp.ne.s32.totalorder %s204, %s205
      %p217 = scmp.eq.s32.totalorder %s37, 5
      %p218 = por %p216, %p217
      %p220 = scmp.ne.s32.totalorder %s205, %s219
      %p221 = scmp.eq.s32.totalorder %s37, 0
      %p222 = por %p220, %p221
      %s224 = sadd.s32 %s223, 1
      %p227 = scmp.eq.s32.totalorder %s31, 5
      %p228 = scmp.ne.s32.totalorder %s223, %s225
      %p229 = scmp.eq.s32.totalorder %s31, 0
      %p230 = por %p228, %p229
      %p231 = scmp.ne.s32.totalorder %s223, %s225
      %p232 = scmp.eq.s32.totalorder %s36, 5
      %p233 = por %p231, %p232
      %p234 = scmp.ne.s32.totalorder %s225, %s226
      %p235 = scmp.eq.s32.totalorder %s36, 0
      %p236 = por %p234, %p235
      %p237 = scmp.ne.s32.totalorder %s225, %s226
      %p238 = scmp.eq.s32.totalorder %s37, 5
      %p239 = por %p237, %p238
      %p241 = scmp.ne.s32.totalorder %s226, %s240
      %p242 = scmp.eq.s32.totalorder %s37, 0
      %p243 = por %p241, %p242
      %s245 = sadd.s32 %s244, 1
      %p248 = scmp.eq.s32.totalorder %s31, 5
      %p249 = scmp.ne.s32.totalorder %s244, %s246
      %p250 = scmp.eq.s32.totalorder %s31, 0
      %p251 = por %p249, %p250
      %p252 = scmp.ne.s32.totalorder %s244, %s246
      %p253 = scmp.eq.s32.totalorder %s36, 5
      %p254 = por %p252, %p253
      %p255 = scmp.ne.s32.totalorder %s246, %s247
      %p256 = scmp.eq.s32.totalorder %s36, 0
      %p257 = por %p255, %p256
      %p258 = scmp.ne.s32.totalorder %s246, %s247
      %p259 = scmp.eq.s32.totalorder %s37, 5
      %p260 = por %p258, %p259
      %p262 = scmp.ne.s32.totalorder %s247, %s261
      %p263 = scmp.eq.s32.totalorder %s37, 0
      %p264 = por %p262, %p263
      %s266 = sadd.s32 %s265, 1
      %p269 = scmp.eq.s32.totalorder %s31, 5
      %p270 = scmp.ne.s32.totalorder %s265, %s267
      %p271 = scmp.eq.s32.totalorder %s31, 0
      %p272 = por %p270, %p271
      %p273 = scmp.ne.s32.totalorder %s265, %s267
      %p274 = scmp.eq.s32.totalorder %s36, 5
      %p275 = por %p273, %p274
      %p276 = scmp.ne.s32.totalorder %s267, %s268
      %p277 = scmp.eq.s32.totalorder %s36, 0
      %p278 = por %p276, %p277
      %p279 = scmp.ne.s32.totalorder %s267, %s268
      %p280 = scmp.eq.s32.totalorder %s37, 5
      %p281 = por %p279, %p280
      %p283 = scmp.ne.s32.totalorder %s268, %s282
      %p284 = scmp.eq.s32.totalorder %s37, 0
      %p285 = por %p283, %p284
      %s287 = sadd.s32 %s286, 1
      %p290 = scmp.eq.s32.totalorder %s31, 5
      %p291 = scmp.ne.s32.totalorder %s286, %s288
      %p292 = scmp.eq.s32.totalorder %s31, 0
      %p293 = por %p291, %p292
      %p294 = scmp.ne.s32.totalorder %s286, %s288
      %p295 = scmp.eq.s32.totalorder %s36, 5
      %p296 = por %p294, %p295
      %p297 = scmp.ne.s32.totalorder %s288, %s289
      %p298 = scmp.eq.s32.totalorder %s36, 0
      %p299 = por %p297, %p298
      %p300 = scmp.ne.s32.totalorder %s288, %s289
      %p301 = scmp.eq.s32.totalorder %s37, 5
      %p302 = por %p300, %p301
      %p304 = scmp.ne.s32.totalorder %s289, %s303
      %p305 = scmp.eq.s32.totalorder %s37, 0
      %p306 = por %p304, %p305
      %s308 = sadd.s32 %s307, 1
      %p311 = scmp.eq.s32.totalorder %s31, 5
      %p312 = scmp.ne.s32.totalorder %s307, %s309
      %p313 = scmp.eq.s32.totalorder %s31, 0
      %p314 = por %p312, %p313
      %p315 = scmp.ne.s32.totalorder %s307, %s309
      %p316 = scmp.eq.s32.totalorder %s36, 5
      %p317 = por %p315, %p316
      %p318 = scmp.ne.s32.totalorder %s309, %s310
      %p319 = scmp.eq.s32.totalorder %s36, 0
      %p320 = por %p318, %p319
      %p321 = scmp.ne.s32.totalorder %s309, %s310
      %p322 = scmp.eq.s32.totalorder %s37, 5
      %p323 = por %p321, %p322
      %p325 = scmp.ne.s32.totalorder %s310, %s324
      %p326 = scmp.eq.s32.totalorder %s37, 0
      %p327 = por %p325, %p326
      %s329 = sadd.s32 %s328, 1
      %p332 = scmp.eq.s32.totalorder %s31, 5
      %p333 = scmp.ne.s32.totalorder %s328, %s330
      %p334 = scmp.eq.s32.totalorder %s31, 0
      %p335 = por %p333, %p334
      %p336 = scmp.ne.s32.totalorder %s328, %s330
      %p337 = scmp.eq.s32.totalorder %s36, 5
      %p338 = por %p336, %p337
      %p339 = scmp.ne.s32.totalorder %s330, %s331
      %p340 = scmp.eq.s32.totalorder %s36, 0
      %p341 = por %p339, %p340
      %p342 = scmp.ne.s32.totalorder %s330, %s331
      %p343 = scmp.eq.s32.totalorder %s37, 5
      %p344 = por %p342, %p343
      %p346 = scmp.ne.s32.totalorder %s331, %s345
      %p347 = scmp.eq.s32.totalorder %s37, 0
      %p348 = por %p346, %p347
      %s350 = sadd.s32 %s349, 1
      %p353 = scmp.eq.s32.totalorder %s31, 5
      %p354 = scmp.ne.s32.totalorder %s349, %s351
      %p355 = scmp.eq.s32.totalorder %s31, 0
      %p356 = por %p354, %p355
      %p357 = scmp.ne.s32.totalorder %s349, %s351
      %p358 = scmp.eq.s32.totalorder %s36, 5
      %p359 = por %p357, %p358
      %p360 = scmp.ne.s32.totalorder %s351, %s352
      %p361 = scmp.eq.s32.totalorder %s36, 0
      %p362 = por %p360, %p361
      %p363 = scmp.ne.s32.totalorder %s351, %s352
      %p364 = scmp.eq.s32.totalorder %s37, 5
      %p365 = por %p363, %p364
      %p367 = scmp.ne.s32.totalorder %s352, %s366
      %p368 = scmp.eq.s32.totalorder %s37, 0
      %p369 = por %p367, %p368
      %s371 = sadd.s32 %s370, 1
      %p374 = scmp.eq.s32.totalorder %s31, 5
      %p375 = scmp.ne.s32.totalorder %s370, %s372
      %p376 = scmp.eq.s32.totalorder %s31, 0
      %p377 = por %p375, %p376
      %p378 = scmp.ne.s32.totalorder %s370, %s372
      %p379 = scmp.eq.s32.totalorder %s36, 5
      %p380 = por %p378, %p379
      %p381 = scmp.ne.s32.totalorder %s372, %s373
      %p382 = scmp.eq.s32.totalorder %s36, 0
      %p383 = por %p381, %p382
      %p384 = scmp.ne.s32.totalorder %s372, %s373
      %p385 = scmp.eq.s32.totalorder %s37, 5
      %p386 = por %p384, %p385
      %p388 = scmp.ne.s32.totalorder %s373, %s387
      %p389 = scmp.eq.s32.totalorder %s37, 0
      %p390 = por %p388, %p389
      %s392 = sadd.s32 %s391, 1
      %p395 = scmp.eq.s32.totalorder %s31, 5
      %p396 = scmp.ne.s32.totalorder %s391, %s393
      %p397 = scmp.eq.s32.totalorder %s31, 0
      %p398 = por %p396, %p397
      %p399 = scmp.ne.s32.totalorder %s391, %s393
      %p400 = scmp.eq.s32.totalorder %s36, 5
      %p401 = por %p399, %p400
      %p402 = scmp.ne.s32.totalorder %s393, %s394
      %p403 = scmp.eq.s32.totalorder %s36, 0
      %p404 = por %p402, %p403
      %p405 = scmp.ne.s32.totalorder %s393, %s394
      %p406 = scmp.eq.s32.totalorder %s37, 5
      %p407 = por %p405, %p406
      %p409 = scmp.ne.s32.totalorder %s394, %s408
      %p410 = scmp.eq.s32.totalorder %s37, 0
      %p411 = por %p409, %p410
      %s413 = sadd.s32 %s412, 1
      %p416 = scmp.eq.s32.totalorder %s31, 5
      %p417 = scmp.ne.s32.totalorder %s412, %s414
      %p418 = scmp.eq.s32.totalorder %s31, 0
      %p419 = por %p417, %p418
      %p420 = scmp.ne.s32.totalorder %s412, %s414
      %p421 = scmp.eq.s32.totalorder %s36, 5
      %p422 = por %p420, %p421
      %p423 = scmp.ne.s32.totalorder %s414, %s415
      %p424 = scmp.eq.s32.totalorder %s36, 0
      %p425 = por %p423, %p424
      %p426 = scmp.ne.s32.totalorder %s414, %s415
      %p427 = scmp.eq.s32.totalorder %s37, 5
      %p428 = por %p426, %p427
      %p430 = scmp.ne.s32.totalorder %s415, %s429
      %p431 = scmp.eq.s32.totalorder %s37, 0
      %p432 = por %p430, %p431
      %s433 = ssub.s32 %s38, %s50
      %p434 = scmp.eq.s32.totalorder %s433, 0
      %s436 = sadd.s32 %s435, 1
      %s437 = scalar_select %p434, %s435, %s436
      %p440 = pneg %p434
      %p441 = scmp.eq.s32.totalorder %s31, 5
      %p442 = por %p440, %p441
      %p443 = scmp.ne.s32.totalorder %s435, %s438
      %p444 = scmp.eq.s32.totalorder %s31, 0
      %p445 = por %p443, %p444
      %p446 = scmp.ne.s32.totalorder %s435, %s438
      %p447 = scmp.eq.s32.totalorder %s36, 5
      %p448 = por %p446, %p447
      %p449 = scmp.ne.s32.totalorder %s438, %s439
      %p450 = scmp.eq.s32.totalorder %s36, 0
      %p451 = por %p449, %p450
      %p452 = scmp.ne.s32.totalorder %s438, %s439
      %p453 = scmp.eq.s32.totalorder %s37, 5
      %p454 = por %p452, %p453
      %p456 = scmp.ne.s32.totalorder %s439, %s455
      %p457 = scmp.eq.s32.totalorder %s37, 0
      %p458 = por %p456, %p457
      %p459 = scmp.le.s32.totalorder 1, %s31
      %p460 = scmp.lt.s32.totalorder %s31, 7
      %p461 = pnand %p459, %p460
      %p462 = pneg %p461
      // Predicated region
      $region9: #{tpu_custom_call.1} parent=5 // pred_check
        _
      $region10: #{tpu_custom_call.1} parent=5 // pred_check_branch
        %464 = sbr.rel (%p461) target = $region12
      $region11: #{tpu_custom_call.1} parent=5 // pred_region
        %s465 = ssub.s32 %s31, 1
        // Predicated region
        $region13: #{tpu_custom_call.1} parent=11 // pred_check
          %p466 = pneg %p64
        $region14: #{tpu_custom_call.1} parent=11 // pred_check_branch
          %468 = sbr.rel (%p466) target = $region16
        $region15: #{tpu_custom_call.1} parent=11 // pred_region
          _
        $region16: #{tpu_custom_call.1} parent=11 // pred_fallthru
          _
        // Predicated region
        $region17: #{tpu_custom_call.1} parent=11 // pred_check
          %p469 = pneg %p215
        $region18: #{tpu_custom_call.1} parent=11 // pred_check_branch
          %471 = sbr.rel (%p469) target = $region20
        $region19: #{tpu_custom_call.1} parent=11 // pred_region
          _
        $region20: #{tpu_custom_call.1} parent=11 // pred_fallthru
          _
        // Predicated region
        $region21: #{tpu_custom_call.1} parent=11 // pred_check
          %p472 = pneg %p236
        $region22: #{tpu_custom_call.1} parent=11 // pred_check_branch
          %474 = sbr.rel (%p472) target = $region24
        $region23: #{tpu_custom_call.1} parent=11 // pred_region
          _
        $region24: #{tpu_custom_call.1} parent=11 // pred_fallthru
          _
        // Predicated region
        $region25: #{tpu_custom_call.1} parent=11 // pred_check
          %p475 = pneg %p257
        $region26: #{tpu_custom_call.1} parent=11 // pred_check_branch
          %477 = sbr.rel (%p475) target = $region28
        $region27: #{tpu_custom_call.1} parent=11 // pred_region
          %s479 = ssub.s32 2048, 2048
          %480 = vsyncadd [#allocation6], %s479
          %s481 = sshll.u32 [#allocation5], 4
          %s482 = int_to_ptr.vmem [resolvable:$true] %s481
          %487 = dma.hbm_to_vmem [thread:$0]  %s8, 2048, %s482, [#allocation6], 128, 128, 8
        $region28: #{tpu_custom_call.1} parent=11 // pred_fallthru
          _
        // Predicated region
        $region29: #{tpu_custom_call.1} parent=11 // pred_check
          %p488 = pneg %p278
        $region30: #{tpu_custom_call.1} parent=11 // pred_check_branch
          %490 = sbr.rel (%p488) target = $region32
        $region31: #{tpu_custom_call.1} parent=11 // pred_region
          _
        $region32: #{tpu_custom_call.1} parent=11 // pred_fallthru
          _
        // Predicated region
        $region33: #{tpu_custom_call.1} parent=11 // pred_check
          %p491 = pneg %p299
        $region34: #{tpu_custom_call.1} parent=11 // pred_check_branch
          %493 = sbr.rel (%p491) target = $region36
        $region35: #{tpu_custom_call.1} parent=11 // pred_region
          _
        $region36: #{tpu_custom_call.1} parent=11 // pred_fallthru
          _
        // Predicated region
        $region37: #{tpu_custom_call.1} parent=11 // pred_check
          %p494 = pneg %p320
        $region38: #{tpu_custom_call.1} parent=11 // pred_check_branch
          %496 = sbr.rel (%p494) target = $region40
        $region39: #{tpu_custom_call.1} parent=11 // pred_region
          _
        $region40: #{tpu_custom_call.1} parent=11 // pred_fallthru
          _
        // Predicated region
        $region41: #{tpu_custom_call.1} parent=11 // pred_check
          %p497 = pneg %p341
        $region42: #{tpu_custom_call.1} parent=11 // pred_check_branch
          %499 = sbr.rel (%p497) target = $region44
        $region43: #{tpu_custom_call.1} parent=11 // pred_region
          %s501 = ssub.s32 2048, 2048
          %502 = vsyncadd [#allocation6], %s501
          %s503 = sshll.u32 [#allocation7], 4
          %s504 = int_to_ptr.vmem [resolvable:$true] %s503
          %509 = dma.hbm_to_vmem [thread:$0]  %s12, 2048, %s504, [#allocation6], 128, 128, 8
        $region44: #{tpu_custom_call.1} parent=11 // pred_fallthru
          _
        // Predicated region
        $region45: #{tpu_custom_call.1} parent=11 // pred_check
          %p510 = pneg %p362
        $region46: #{tpu_custom_call.1} parent=11 // pred_check_branch
          %512 = sbr.rel (%p510) target = $region48
        $region47: #{tpu_custom_call.1} parent=11 // pred_region
          %s514 = ssub.s32 2048, 2048
          %515 = vsyncadd [#allocation9], %s514
          %s516 = sshll.u32 [#allocation8], 4
          %s517 = int_to_ptr.vmem [resolvable:$true] %s516
          %522 = dma.hbm_to_vmem [thread:$0]  %s13, 2048, %s517, [#allocation9], 128, 128, 8
        $region48: #{tpu_custom_call.1} parent=11 // pred_fallthru
          _
        // Predicated region
        $region49: #{tpu_custom_call.1} parent=11 // pred_check
          %p523 = pneg %p383
        $region50: #{tpu_custom_call.1} parent=11 // pred_check_branch
          %525 = sbr.rel (%p523) target = $region52
        $region51: #{tpu_custom_call.1} parent=11 // pred_region
          _
        $region52: #{tpu_custom_call.1} parent=11 // pred_fallthru
          _
        // Predicated region
        $region53: #{tpu_custom_call.1} parent=11 // pred_check
          %p526 = pneg %p404
        $region54: #{tpu_custom_call.1} parent=11 // pred_check_branch
          %528 = sbr.rel (%p526) target = $region56
        $region55: #{tpu_custom_call.1} parent=11 // pred_region
          %s530 = ssub.s32 2048, 2048
          %531 = vsyncadd [#allocation9], %s530
          %s532 = sshll.u32 [#allocation10], 4
          %s533 = int_to_ptr.vmem [resolvable:$true] %s532
          %538 = dma.hbm_to_vmem [thread:$0]  %s15, 2048, %s533, [#allocation9], 128, 128, 8
        $region56: #{tpu_custom_call.1} parent=11 // pred_fallthru
          _
        // Predicated region
        $region57: #{tpu_custom_call.1} parent=11 // pred_check
          %p539 = pneg %p425
        $region58: #{tpu_custom_call.1} parent=11 // pred_check_branch
          %541 = sbr.rel (%p539) target = $region60
        $region59: #{tpu_custom_call.1} parent=11 // pred_region
          _
        $region60: #{tpu_custom_call.1} parent=11 // pred_fallthru
          _
      $region12: #{tpu_custom_call.1} parent=5 // pred_fallthru
        _
      %p542 = scmp.lt.s32.totalorder %s31, 6
      // Predicated region
      $region61: #{tpu_custom_call.1} parent=5 // pred_check
        %p543 = pneg %p542
      $region62: #{tpu_custom_call.1} parent=5 // pred_check_branch
        %545 = sbr.rel (%p543) target = $region64
      $region63: #{tpu_custom_call.1} parent=5 // pred_region
        // Predicated region
        $region65: #{tpu_custom_call.1} parent=63 // pred_check
          %p546 = pneg %p84
        $region66: #{tpu_custom_call.1} parent=63 // pred_check_branch
          %548 = sbr.rel (%p546) target = $region68
        $region67: #{tpu_custom_call.1} parent=63 // pred_region
          %s549 = sand.u32 %s74, 1
          %s550 = scalar_lea.sflag [#allocation3], %s549
          %s551 = sand.u32 %s74, 1
          %s552 = smul.addr %s551, 128
          %s553 = scalar_lea.vmem [#allocation2], %s552
          %s554 = smul.u32 16, %s38
          %s556 = ssub.s32 2048, 2048
          %557 = vsyncadd %s550, %s556
          %s558 = smul.addr %s554, 128
          %s559 = scalar_lea.hbm %s1, %s558
          %s560 = sshll.u32 %s553, 4
          %s561 = int_to_ptr.vmem [resolvable:$true] %s560
          %566 = dma.hbm_to_vmem [thread:$0]  %s559, 2048, %s561, %s550, 128, 128, 8
        $region68: #{tpu_custom_call.1} parent=63 // pred_fallthru
          _
        // Predicated region
        $region69: #{tpu_custom_call.1} parent=63 // pred_check
          %p567 = pneg %p110
        $region70: #{tpu_custom_call.1} parent=63 // pred_check_branch
          %569 = sbr.rel (%p567) target = $region72
        $region71: #{tpu_custom_call.1} parent=63 // pred_region
          %s570 = smul.u32 16, %s39
          %p571 = scmp.lt.s32.totalorder %s570, 47
          %s572 = scalar_select %p571, %s570, 47
          %s573 = smul.addr %s572, 8
          %s574 = scalar_lea.vmem %s2, %s573
          %s575 = smul.u32 16, %s39
        $region72: #{tpu_custom_call.1} parent=63 // pred_fallthru
          _
        // Predicated region
        $region73: #{tpu_custom_call.1} parent=63 // pred_check
          %p576 = pneg %p136
        $region74: #{tpu_custom_call.1} parent=63 // pred_check_branch
          %578 = sbr.rel (%p576) target = $region76
        $region75: #{tpu_custom_call.1} parent=63 // pred_region
          %s579 = smul.u32 16, %s39
          %p580 = scmp.lt.s32.totalorder %s579, 47
          %s581 = scalar_select %p580, %s579, 47
          %s582 = smul.addr %s581, 8
          %s583 = scalar_lea.vmem %s3, %s582
          %s584 = smul.u32 16, %s39
        $region76: #{tpu_custom_call.1} parent=63 // pred_fallthru
          _
        // Predicated region
        $region77: #{tpu_custom_call.1} parent=63 // pred_check
          %p585 = pneg %p162
        $region78: #{tpu_custom_call.1} parent=63 // pred_check_branch
          %587 = sbr.rel (%p585) target = $region80
        $region79: #{tpu_custom_call.1} parent=63 // pred_region
          %s588 = smul.u32 16, %s39
          %p589 = scmp.lt.s32.totalorder %s588, 47
          %s590 = scalar_select %p589, %s588, 47
          %s591 = smul.addr %s590, 8
          %s592 = scalar_lea.vmem %s4, %s591
          %s593 = smul.u32 16, %s39
        $region80: #{tpu_custom_call.1} parent=63 // pred_fallthru
          _
        // Predicated region
        $region81: #{tpu_custom_call.1} parent=63 // pred_check
          %p594 = pneg %p188
        $region82: #{tpu_custom_call.1} parent=63 // pred_check_branch
          %596 = sbr.rel (%p594) target = $region84
        $region83: #{tpu_custom_call.1} parent=63 // pred_region
          %p597 = scmp.lt.s32.totalorder %s39, 2
          %s598 = scalar_select %p597, %s39, 2
          %s599 = scalar_lea.vmem %s5, %s598
        $region84: #{tpu_custom_call.1} parent=63 // pred_fallthru
          _
      $region64: #{tpu_custom_call.1} parent=5 // pred_fallthru
        _
      %p600 = scmp.le.s32.totalorder 1, %s31
      %p601 = scmp.lt.s32.totalorder %s31, 7
      %p602 = pnand %p600, %p601
      %p603 = pneg %p602
      // Predicated region
      $region85: #{tpu_custom_call.1} parent=5 // pred_check
        _
      $region86: #{tpu_custom_call.1} parent=5 // pred_check_branch
        %605 = sbr.rel (%p602) target = $region88
      $region87: #{tpu_custom_call.1} parent=5 // pred_region
        %s606 = ssub.s32 %s31, 1
        %s607 = sand.u32 %s77, 1
        %s608 = scalar_lea.sflag [#allocation3], %s607
        %s609 = sand.u32 %s77, 1
        %s610 = smul.addr %s609, 128
        %s611 = scalar_lea.vmem [#allocation2], %s610
        // Predicated region
        $region89: #{tpu_custom_call.1} parent=87 // pred_check
          %p612 = pneg %p90
        $region90: #{tpu_custom_call.1} parent=87 // pred_check_branch
          %614 = sbr.rel (%p612) target = $region92
        $region91: #{tpu_custom_call.1} parent=87 // pred_region
          %615 = dma.done %s608, 2048
        $region92: #{tpu_custom_call.1} parent=87 // pred_fallthru
          _
        // Predicated region
        $region93: #{tpu_custom_call.1} parent=87 // pred_check
          %p616 = pneg %p257
        $region94: #{tpu_custom_call.1} parent=87 // pred_check_branch
          %618 = sbr.rel (%p616) target = $region96
        $region95: #{tpu_custom_call.1} parent=87 // pred_region
          %619 = dma.done [#allocation6], 2048
        $region96: #{tpu_custom_call.1} parent=87 // pred_fallthru
          _
        // Predicated region
        $region97: #{tpu_custom_call.1} parent=87 // pred_check
          %p620 = pneg %p341
        $region98: #{tpu_custom_call.1} parent=87 // pred_check_branch
          %622 = sbr.rel (%p620) target = $region100
        $region99: #{tpu_custom_call.1} parent=87 // pred_region
          %623 = dma.done [#allocation6], 2048
        $region100: #{tpu_custom_call.1} parent=87 // pred_fallthru
          _
        // Predicated region
        $region101: #{tpu_custom_call.1} parent=87 // pred_check
          %p624 = pneg %p362
        $region102: #{tpu_custom_call.1} parent=87 // pred_check_branch
          %626 = sbr.rel (%p624) target = $region104
        $region103: #{tpu_custom_call.1} parent=87 // pred_region
          %627 = dma.done [#allocation9], 2048
        $region104: #{tpu_custom_call.1} parent=87 // pred_fallthru
          _
        // Predicated region
        $region105: #{tpu_custom_call.1} parent=87 // pred_check
          %p628 = pneg %p404
        $region106: #{tpu_custom_call.1} parent=87 // pred_check_branch
          %630 = sbr.rel (%p628) target = $region108
        $region107: #{tpu_custom_call.1} parent=87 // pred_region
          %631 = dma.done [#allocation9], 2048
        $region108: #{tpu_custom_call.1} parent=87 // pred_fallthru
          _
        %p632 = pneg %p64
        %p633 = pneg %p61
        %s634 = sand.u32 %s77, 1
        %s635 = scalar_lea.sflag [#allocation3], %s634
        %s636 = sand.u32 %s77, 1
        %s637 = smul.addr %s636, 128
        %s638 = scalar_lea.vmem [#allocation2], %s637
        %p639 = pneg %p90
        %p640 = pneg %p87
        %s641 = smul.u32 16, %s41
        %p642 = scmp.lt.s32.totalorder %s641, 47
        %s643 = scalar_select %p642, %s641, 47
        %s644 = smul.addr %s643, 8
        %s645 = scalar_lea.vmem %s2, %s644
        %p646 = pneg %p116
        %p647 = pneg %p113
        %s648 = smul.u32 16, %s41
        %p649 = scmp.lt.s32.totalorder %s648, 47
        %s650 = scalar_select %p649, %s648, 47
        %s651 = smul.addr %s650, 8
        %s652 = scalar_lea.vmem %s3, %s651
        %p653 = pneg %p142
        %p654 = pneg %p139
        %s655 = smul.u32 16, %s41
        %p656 = scmp.lt.s32.totalorder %s655, 47
        %s657 = scalar_select %p656, %s655, 47
        %s658 = smul.addr %s657, 8
        %s659 = scalar_lea.vmem %s4, %s658
        %p660 = pneg %p168
        %p661 = pneg %p165
        %p662 = scmp.lt.s32.totalorder %s41, 2
        %s663 = scalar_select %p662, %s41, 2
        %s664 = scalar_lea.vmem %s5, %s663
        %p665 = pneg %p194
        %p666 = pneg %p191
        %p667 = pneg %p215
        %p668 = pneg %p212
        %p669 = pneg %p236
        %p670 = pneg %p233
        %p671 = pneg %p257
        %p672 = pneg %p254
        %p673 = pneg %p278
        %p674 = pneg %p275
        %p675 = pneg %p299
        %p676 = pneg %p296
        %p677 = pneg %p320
        %p678 = pneg %p317
        %p679 = pneg %p341
        %p680 = pneg %p338
        %p681 = pneg %p362
        %p682 = pneg %p359
        %p683 = pneg %p383
        %p684 = pneg %p380
        %p685 = pneg %p404
        %p686 = pneg %p401
        %p687 = pneg %p425
        %p688 = pneg %p422
        %p689 = pneg %p451
        %p690 = pneg %p448
        %s691 = sand.u32 %s438, 1
        %s692 = scalar_lea.sflag [#allocation4], %s691
        %s693 = sand.u32 %s438, 1
        %s694 = smul.addr %s693, 128
        %s695 = scalar_lea.vmem [#allocation11], %s694
        %s696 = smul.u32 16, %s40
        %s697 = smul.u32 16, %s41
        %p698 = scmp.lt.s32.totalorder %s697, 47
        %s699 = scalar_select %p698, %s697, 47
        %s700 = smul.addr %s699, 8
        %s701 = scalar_lea.vmem %s2, %s700
        %s702 = smul.u32 16, %s41
        %s703 = smul.u32 16, %s41
        %p704 = scmp.lt.s32.totalorder %s703, 47
        %s705 = scalar_select %p704, %s703, 47
        %s706 = smul.addr %s705, 8
        %s707 = scalar_lea.vmem %s3, %s706
        %s708 = smul.u32 16, %s41
        %s709 = smul.u32 16, %s41
        %p710 = scmp.lt.s32.totalorder %s709, 47
        %s711 = scalar_select %p710, %s709, 47
        %s712 = smul.addr %s711, 8
        %s713 = scalar_lea.vmem %s4, %s712
        %s714 = smul.u32 16, %s41
        %p715 = scmp.lt.s32.totalorder %s41, 2
        %s716 = scalar_select %p715, %s41, 2
        %s717 = scalar_lea.vmem %s5, %s716
        %s718 = smul.u32 16, %s40
        %p719 = scmp.eq.s32.totalorder %s41, 0
        // Predicated region
        $region109: #{tpu_custom_call.1} parent=87 // pred_check
          %p720 = pneg %p719
        $region110: #{tpu_custom_call.1} parent=87 // pred_check_branch
          %722 = sbr.rel (%p720) target = $region112
        $region111: #{tpu_custom_call.1} parent=87 // pred_region
          %v723 = vld [vmem:[%s611] sm:$0xff]
          %v724 = vld [vmem:[%s611 + $0x8] sm:$0xff]
          %v725 = vld [vmem:[%s611 + $0x10] sm:$0xff]
          %v726 = vld [vmem:[%s611 + $0x18] sm:$0xff]
          %v727 = vld [vmem:[%s611 + $0x20] sm:$0xff]
          %v728 = vld [vmem:[%s611 + $0x28] sm:$0xff]
          %v729 = vld [vmem:[%s611 + $0x30] sm:$0xff]
          %v730 = vld [vmem:[%s611 + $0x38] sm:$0xff]
          %v731 = vld [vmem:[%s611 + $0x40] sm:$0xff]
          %v732 = vld [vmem:[%s611 + $0x48] sm:$0xff]
          %v733 = vld [vmem:[%s611 + $0x50] sm:$0xff]
          %v734 = vld [vmem:[%s611 + $0x58] sm:$0xff]
          %v735 = vld [vmem:[%s611 + $0x60] sm:$0xff]
          %v736 = vld [vmem:[%s611 + $0x68] sm:$0xff]
          %v737 = vld [vmem:[%s611 + $0x70] sm:$0xff]
          %v738 = vld [vmem:[%s611 + $0x78] sm:$0xff]
          %739 = vst [vmem:[%s695] sm:$0xff] %v723
          %740 = vst [vmem:[%s695 + $0x8] sm:$0xff] %v724
          %741 = vst [vmem:[%s695 + $0x10] sm:$0xff] %v725
          %742 = vst [vmem:[%s695 + $0x18] sm:$0xff] %v726
          %743 = vst [vmem:[%s695 + $0x20] sm:$0xff] %v727
          %744 = vst [vmem:[%s695 + $0x28] sm:$0xff] %v728
          %745 = vst [vmem:[%s695 + $0x30] sm:$0xff] %v729
          %746 = vst [vmem:[%s695 + $0x38] sm:$0xff] %v730
          %747 = vst [vmem:[%s695 + $0x40] sm:$0xff] %v731
          %748 = vst [vmem:[%s695 + $0x48] sm:$0xff] %v732
          %749 = vst [vmem:[%s695 + $0x50] sm:$0xff] %v733
          %750 = vst [vmem:[%s695 + $0x58] sm:$0xff] %v734
          %751 = vst [vmem:[%s695 + $0x60] sm:$0xff] %v735
          %752 = vst [vmem:[%s695 + $0x68] sm:$0xff] %v736
          %753 = vst [vmem:[%s695 + $0x70] sm:$0xff] %v737
          %754 = vst [vmem:[%s695 + $0x78] sm:$0xff] %v738
        $region112: #{tpu_custom_call.1} parent=87 // pred_fallthru
          _
        %v755 = vld [vmem:[%s701] sm:$0xff]
        %v756 = vld [vmem:[%s701 + $0x8] sm:$0xff]
        %v757 = vld [vmem:[%s701 + $0x10] sm:$0xff]
        %v758 = vld [vmem:[%s701 + $0x18] sm:$0xff]
        %v759 = vld [vmem:[%s701 + $0x20] sm:$0xff]
        %v760 = vld [vmem:[%s701 + $0x28] sm:$0xff]
        %v761 = vld [vmem:[%s701 + $0x30] sm:$0xff]
        %v762 = vld [vmem:[%s701 + $0x38] sm:$0xff]
        %v763 = vld [vmem:[%s701 + $0x40] sm:$0xff]
        %v764 = vld [vmem:[%s701 + $0x48] sm:$0xff]
        %v765 = vld [vmem:[%s701 + $0x50] sm:$0xff]
        %v766 = vld [vmem:[%s701 + $0x58] sm:$0xff]
        %v767 = vld [vmem:[%s701 + $0x60] sm:$0xff]
        %v768 = vld [vmem:[%s701 + $0x68] sm:$0xff]
        %v769 = vld [vmem:[%s701 + $0x70] sm:$0xff]
        %v770 = vld [vmem:[%s701 + $0x78] sm:$0xff]
        %v771 = vld [vmem:[%s6] sm:$0xff]
        %v772 = vld [vmem:[%s6 + $0x8] sm:$0xff]
        %v773 = vld [vmem:[%s6 + $0x10] sm:$0xff]
        %v774 = vld [vmem:[%s6 + $0x18] sm:$0xff]
        %v775 = vld [vmem:[%s6 + $0x20] sm:$0xff]
        %v776 = vld [vmem:[%s6 + $0x28] sm:$0xff]
        %v777 = vld [vmem:[%s6 + $0x30] sm:$0xff]
        %v778 = vld [vmem:[%s6 + $0x38] sm:$0xff]
        %v779 = vld [vmem:[%s6 + $0x40] sm:$0xff]
        %v780 = vld [vmem:[%s6 + $0x48] sm:$0xff]
        %v781 = vld [vmem:[%s6 + $0x50] sm:$0xff]
        %v782 = vld [vmem:[%s6 + $0x58] sm:$0xff]
        %v783 = vld [vmem:[%s6 + $0x60] sm:$0xff]
        %v784 = vld [vmem:[%s6 + $0x68] sm:$0xff]
        %v785 = vld [vmem:[%s6 + $0x70] sm:$0xff]
        %v786 = vld [vmem:[%s6 + $0x78] sm:$0xff]
        %v787 = vld [vmem:[%s7] sm:$0x1]
        %v789 = vlaneseq
        %v790 = vshrl.u32 %v789, 7
        %v791 = vsub.s32 0, %v790
        %v792 = vrot.slane %v787, %v791
        %794 = vmatprep.subr.mxu0 0.0
        %795 = vmatpush1.msra.mxu0 %v771
        %796 = vmatprep.subr.mxu0 0.0
        %797 = vmatpush1.msra.mxu0 %v772
        %798 = vmatprep.subr.mxu0 0.0
        %799 = vmatpush1.msra.mxu0 %v773
        %800 = vmatprep.subr.mxu0 0.0
        %801 = vmatpush1.msra.mxu0 %v774
        %802 = vmatprep.subr.mxu0 0.0
        %803 = vmatpush1.msra.mxu0 %v775
        %804 = vmatprep.subr.mxu0 0.0
        %805 = vmatpush1.msra.mxu0 %v776
        %806 = vmatprep.subr.mxu0 0.0
        %807 = vmatpush1.msra.mxu0 %v777
        %808 = vmatprep.subr.mxu0 0.0
        %809 = vmatpush1.msra.mxu0 %v778
        %810 = vmatprep.subr.mxu0 0.0
        %811 = vmatpush1.msra.mxu0 %v779
        %812 = vmatprep.subr.mxu0 0.0
        %813 = vmatpush1.msra.mxu0 %v780
        %814 = vmatprep.subr.mxu0 0.0
        %815 = vmatpush1.msra.mxu0 %v781
        %816 = vmatprep.subr.mxu0 0.0
        %817 = vmatpush1.msra.mxu0 %v782
        %818 = vmatprep.subr.mxu0 0.0
        %819 = vmatpush1.msra.mxu0 %v783
        %820 = vmatprep.subr.mxu0 0.0
        %821 = vmatpush1.msra.mxu0 %v784
        %822 = vmatprep.subr.mxu0 0.0
        %823 = vmatpush1.msra.mxu0 %v785
        %824 = vmatprep.subr.mxu0 0.0
        %825 = vmatpush1.msra.mxu0 %v786
        %826 = vmatprep.subr.mxu0 0.0
        %827 = vmatpush1.msra.mxu0 0.0
        %828 = vmatprep.subr.mxu0 0.0
        %829 = vmatpush1.msra.mxu0 0.0
        %830 = vmatprep.subr.mxu0 0.0
        %831 = vmatpush1.msra.mxu0 0.0
        %832 = vmatprep.subr.mxu0 0.0
        %833 = vmatpush1.msra.mxu0 0.0
        %834 = vmatprep.subr.mxu0 0.0
        %835 = vmatpush1.msra.mxu0 0.0
        %836 = vmatprep.subr.mxu0 0.0
        %837 = vmatpush1.msra.mxu0 0.0
        %838 = vmatprep.subr.mxu0 0.0
        %839 = vmatpush1.msra.mxu0 0.0
        %840 = vmatprep.subr.mxu0 0.0
        %841 = vmatpush1.msra.mxu0 0.0
        %842 = vmatprep.subr.mxu0 0.0
        %843 = vmatpush1.msra.mxu0 0.0
        %844 = vmatprep.subr.mxu0 0.0
        %845 = vmatpush1.msra.mxu0 0.0
        %846 = vmatprep.subr.mxu0 0.0
        %847 = vmatpush1.msra.mxu0 0.0
        %848 = vmatprep.subr.mxu0 0.0
        %849 = vmatpush1.msra.mxu0 0.0
        %850 = vmatprep.subr.mxu0 0.0
        %851 = vmatpush1.msra.mxu0 0.0
        %852 = vmatprep.subr.mxu0 0.0
        %853 = vmatpush1.msra.mxu0 0.0
        %854 = vmatprep.subr.mxu0 0.0
        %855 = vmatpush1.msra.mxu0 0.0
        %856 = vmatprep.subr.mxu0 0.0
        %857 = vmatpush1.msra.mxu0 0.0
        %858 = vmatprep.mubr.f32.mxu0 0.0
        %859 = vmatmul.mubr.f32.gmra.mrb[0].mxu0 %v755
        %v860 = vpop.f32.mrb[0].mxu0
        %v861 = vadd.f32 %v792, %v860
        %v862 = vpop.f32.mrb[0].mxu0
        %863 = vmatprep.mubr.f32.mxu0 0.0
        %864 = vmatmul.mubr.f32.gmra.mrb[0].mxu0 %v756
        %v865 = vpop.f32.mrb[0].mxu0
        %v866 = vadd.f32 %v792, %v865
        %v867 = vpop.f32.mrb[0].mxu0
        %868 = vmatprep.mubr.f32.mxu0 0.0
        %869 = vmatmul.mubr.f32.gmra.mrb[0].mxu0 %v757
        %v870 = vpop.f32.mrb[0].mxu0
        %v871 = vadd.f32 %v792, %v870
        %v872 = vpop.f32.mrb[0].mxu0
        %873 = vmatprep.mubr.f32.mxu0 0.0
        %874 = vmatmul.mubr.f32.gmra.mrb[0].mxu0 %v758
        %v875 = vpop.f32.mrb[0].mxu0
        %v876 = vadd.f32 %v792, %v875
        %v877 = vpop.f32.mrb[0].mxu0
        %878 = vmatprep.mubr.f32.mxu0 0.0
        %879 = vmatmul.mubr.f32.gmra.mrb[0].mxu0 %v759
        %v880 = vpop.f32.mrb[0].mxu0
        %v881 = vadd.f32 %v792, %v880
        %v882 = vpop.f32.mrb[0].mxu0
        %883 = vmatprep.mubr.f32.mxu0 0.0
        %884 = vmatmul.mubr.f32.gmra.mrb[0].mxu0 %v760
        %v885 = vpop.f32.mrb[0].mxu0
        %v886 = vadd.f32 %v792, %v885
        %v887 = vpop.f32.mrb[0].mxu0
        %888 = vmatprep.mubr.f32.mxu0 0.0
        %889 = vmatmul.mubr.f32.gmra.mrb[0].mxu0 %v761
        %v890 = vpop.f32.mrb[0].mxu0
        %v891 = vadd.f32 %v792, %v890
        %v892 = vpop.f32.mrb[0].mxu0
        %893 = vmatprep.mubr.f32.mxu0 0.0
        %894 = vmatmul.mubr.f32.gmra.mrb[0].mxu0 %v762
        %v895 = vpop.f32.mrb[0].mxu0
        %v896 = vadd.f32 %v792, %v895
        %v897 = vpop.f32.mrb[0].mxu0
        %898 = vmatprep.mubr.f32.mxu0 0.0
        %899 = vmatmul.mubr.f32.gmra.mrb[0].mxu0 %v763
        %v900 = vpop.f32.mrb[0].mxu0
        %v901 = vadd.f32 %v792, %v900
        %v902 = vpop.f32.mrb[0].mxu0
        %903 = vmatprep.mubr.f32.mxu0 0.0
        %904 = vmatmul.mubr.f32.gmra.mrb[0].mxu0 %v764
        %v905 = vpop.f32.mrb[0].mxu0
        %v906 = vadd.f32 %v792, %v905
        %v907 = vpop.f32.mrb[0].mxu0
        %908 = vmatprep.mubr.f32.mxu0 0.0
        %909 = vmatmul.mubr.f32.gmra.mrb[0].mxu0 %v765
        %v910 = vpop.f32.mrb[0].mxu0
        %v911 = vadd.f32 %v792, %v910
        %v912 = vpop.f32.mrb[0].mxu0
        %913 = vmatprep.mubr.f32.mxu0 0.0
        %914 = vmatmul.mubr.f32.gmra.mrb[0].mxu0 %v766
        %v915 = vpop.f32.mrb[0].mxu0
        %v916 = vadd.f32 %v792, %v915
        %v917 = vpop.f32.mrb[0].mxu0
        %918 = vmatprep.mubr.f32.mxu0 0.0
        %919 = vmatmul.mubr.f32.gmra.mrb[0].mxu0 %v767
        %v920 = vpop.f32.mrb[0].mxu0
        %v921 = vadd.f32 %v792, %v920
        %v922 = vpop.f32.mrb[0].mxu0
        %923 = vmatprep.mubr.f32.mxu0 0.0
        %924 = vmatmul.mubr.f32.gmra.mrb[0].mxu0 %v768
        %v925 = vpop.f32.mrb[0].mxu0
        %v926 = vadd.f32 %v792, %v925
        %v927 = vpop.f32.mrb[0].mxu0
        %928 = vmatprep.mubr.f32.mxu0 0.0
        %929 = vmatmul.mubr.f32.gmra.mrb[0].mxu0 %v769
        %v930 = vpop.f32.mrb[0].mxu0
        %v931 = vadd.f32 %v792, %v930
        %v932 = vpop.f32.mrb[0].mxu0
        %933 = vmatprep.mubr.f32.mxu0 0.0
        %934 = vmatmul.mubr.f32.gmra.mrb[0].mxu0 %v770
        %v935 = vpop.f32.mrb[0].mxu0
        %v936 = vadd.f32 %v792, %v935
        %v937 = vpop.f32.mrb[0].mxu0
        %938 = vdwg.mxu0
        %v939 = vmax.f32 %v861, 0.0
        %v940 = vmax.f32 %v866, 0.0
        %v941 = vmax.f32 %v871, 0.0
        %v942 = vmax.f32 %v876, 0.0
        %v943 = vmax.f32 %v881, 0.0
        %v944 = vmax.f32 %v886, 0.0
        %v945 = vmax.f32 %v891, 0.0
        %v946 = vmax.f32 %v896, 0.0
        %v947 = vmax.f32 %v901, 0.0
        %v948 = vmax.f32 %v906, 0.0
        %v949 = vmax.f32 %v911, 0.0
        %v950 = vmax.f32 %v916, 0.0
        %v951 = vmax.f32 %v921, 0.0
        %v952 = vmax.f32 %v926, 0.0
        %v953 = vmax.f32 %v931, 0.0
        %v954 = vmax.f32 %v936, 0.0
        %v955 = vld [vmem:[#allocation5] sm:$0xff]
        %v956 = vld [vmem:[#allocation5 + $0x8] sm:$0xff]
        %v957 = vld [vmem:[#allocation5 + $0x10] sm:$0xff]
        %v958 = vld [vmem:[#allocation5 + $0x18] sm:$0xff]
        %v959 = vld [vmem:[#allocation5 + $0x20] sm:$0xff]
        %v960 = vld [vmem:[#allocation5 + $0x28] sm:$0xff]
        %v961 = vld [vmem:[#allocation5 + $0x30] sm:$0xff]
        %v962 = vld [vmem:[#allocation5 + $0x38] sm:$0xff]
        %v963 = vld [vmem:[#allocation5 + $0x40] sm:$0xff]
        %v964 = vld [vmem:[#allocation5 + $0x48] sm:$0xff]
        %v965 = vld [vmem:[#allocation5 + $0x50] sm:$0xff]
        %v966 = vld [vmem:[#allocation5 + $0x58] sm:$0xff]
        %v967 = vld [vmem:[#allocation5 + $0x60] sm:$0xff]
        %v968 = vld [vmem:[#allocation5 + $0x68] sm:$0xff]
        %v969 = vld [vmem:[#allocation5 + $0x70] sm:$0xff]
        %v970 = vld [vmem:[#allocation5 + $0x78] sm:$0xff]
        %v971 = vld [vmem:[%s9] sm:$0x1]
        %v973 = vlaneseq
        %v974 = vshrl.u32 %v973, 7
        %v975 = vsub.s32 0, %v974
        %v976 = vrot.slane %v971, %v975
        %978 = vmatprep.subr.mxu0 0.0
        %979 = vmatpush1.msra.mxu0 %v955
        %980 = vmatprep.subr.mxu0 0.0
        %981 = vmatpush1.msra.mxu0 %v956
        %982 = vmatprep.subr.mxu0 0.0
        %983 = vmatpush1.msra.mxu0 %v957
        %984 = vmatprep.subr.mxu0 0.0
        %985 = vmatpush1.msra.mxu0 %v958
        %986 = vmatprep.subr.mxu0 0.0
        %987 = vmatpush1.msra.mxu0 %v959
        %988 = vmatprep.subr.mxu0 0.0
        %989 = vmatpush1.msra.mxu0 %v960
        %990 = vmatprep.subr.mxu0 0.0
        %991 = vmatpush1.msra.mxu0 %v961
        %992 = vmatprep.subr.mxu0 0.0
        %993 = vmatpush1.msra.mxu0 %v962
        %994 = vmatprep.subr.mxu0 0.0
        %995 = vmatpush1.msra.mxu0 %v963
        %996 = vmatprep.subr.mxu0 0.0
        %997 = vmatpush1.msra.mxu0 %v964
        %998 = vmatprep.subr.mxu0 0.0
        %999 = vmatpush1.msra.mxu0 %v965
        %1000 = vmatprep.subr.mxu0 0.0
        %1001 = vmatpush1.msra.mxu0 %v966
        %1002 = vmatprep.subr.mxu0 0.0
        %1003 = vmatpush1.msra.mxu0 %v967
        %1004 = vmatprep.subr.mxu0 0.0
        %1005 = vmatpush1.msra.mxu0 %v968
        %1006 = vmatprep.subr.mxu0 0.0
        %1007 = vmatpush1.msra.mxu0 %v969
        %1008 = vmatprep.subr.mxu0 0.0
        %1009 = vmatpush1.msra.mxu0 %v970
        %1010 = vmatprep.subr.mxu0 0.0
        %1011 = vmatpush1.msra.mxu0 0.0
        %1012 = vmatprep.subr.mxu0 0.0
        %1013 = vmatpush1.msra.mxu0 0.0
        %1014 = vmatprep.subr.mxu0 0.0
        %1015 = vmatpush1.msra.mxu0 0.0
        %1016 = vmatprep.subr.mxu0 0.0
        %1017 = vmatpush1.msra.mxu0 0.0
        %1018 = vmatprep.subr.mxu0 0.0
        %1019 = vmatpush1.msra.mxu0 0.0
        %1020 = vmatprep.subr.mxu0 0.0
        %1021 = vmatpush1.msra.mxu0 0.0
        %1022 = vmatprep.subr.mxu0 0.0
        %1023 = vmatpush1.msra.mxu0 0.0
        %1024 = vmatprep.subr.mxu0 0.0
        %1025 = vmatpush1.msra.mxu0 0.0
        %1026 = vmatprep.subr.mxu0 0.0
        %1027 = vmatpush1.msra.mxu0 0.0
        %1028 = vmatprep.subr.mxu0 0.0
        %1029 = vmatpush1.msra.mxu0 0.0
        %1030 = vmatprep.subr.mxu0 0.0
        %1031 = vmatpush1.msra.mxu0 0.0
        %1032 = vmatprep.subr.mxu0 0.0
        %1033 = vmatpush1.msra.mxu0 0.0
        %1034 = vmatprep.subr.mxu0 0.0
        %1035 = vmatpush1.msra.mxu0 0.0
        %1036 = vmatprep.subr.mxu0 0.0
        %1037 = vmatpush1.msra.mxu0 0.0
        %1038 = vmatprep.subr.mxu0 0.0
        %1039 = vmatpush1.msra.mxu0 0.0
        %1040 = vmatprep.subr.mxu0 0.0
        %1041 = vmatpush1.msra.mxu0 0.0
        %1042 = vmatprep.mubr.f32.mxu0 0.0
        %1043 = vmatmul.mubr.f32.gmra.mrb[0].mxu0 %v939
        %v1044 = vpop.f32.mrb[0].mxu0
        %v1045 = vadd.f32 %v976, %v1044
        %v1046 = vpop.f32.mrb[0].mxu0
        %1047 = vmatprep.mubr.f32.mxu0 0.0
        %1048 = vmatmul.mubr.f32.gmra.mrb[0].mxu0 %v940
        %v1049 = vpop.f32.mrb[0].mxu0
        %v1050 = vadd.f32 %v976, %v1049
        %v1051 = vpop.f32.mrb[0].mxu0
        %1052 = vmatprep.mubr.f32.mxu0 0.0
        %1053 = vmatmul.mubr.f32.gmra.mrb[0].mxu0 %v941
        %v1054 = vpop.f32.mrb[0].mxu0
        %v1055 = vadd.f32 %v976, %v1054
        %v1056 = vpop.f32.mrb[0].mxu0
        %1057 = vmatprep.mubr.f32.mxu0 0.0
        %1058 = vmatmul.mubr.f32.gmra.mrb[0].mxu0 %v942
        %v1059 = vpop.f32.mrb[0].mxu0
        %v1060 = vadd.f32 %v976, %v1059
        %v1061 = vpop.f32.mrb[0].mxu0
        %1062 = vmatprep.mubr.f32.mxu0 0.0
        %1063 = vmatmul.mubr.f32.gmra.mrb[0].mxu0 %v943
        %v1064 = vpop.f32.mrb[0].mxu0
        %v1065 = vadd.f32 %v976, %v1064
        %v1066 = vpop.f32.mrb[0].mxu0
        %1067 = vmatprep.mubr.f32.mxu0 0.0
        %1068 = vmatmul.mubr.f32.gmra.mrb[0].mxu0 %v944
        %v1069 = vpop.f32.mrb[0].mxu0
        %v1070 = vadd.f32 %v976, %v1069
        %v1071 = vpop.f32.mrb[0].mxu0
        %1072 = vmatprep.mubr.f32.mxu0 0.0
        %1073 = vmatmul.mubr.f32.gmra.mrb[0].mxu0 %v945
        %v1074 = vpop.f32.mrb[0].mxu0
        %v1075 = vadd.f32 %v976, %v1074
        %v1076 = vpop.f32.mrb[0].mxu0
        %1077 = vmatprep.mubr.f32.mxu0 0.0
        %1078 = vmatmul.mubr.f32.gmra.mrb[0].mxu0 %v946
        %v1079 = vpop.f32.mrb[0].mxu0
        %v1080 = vadd.f32 %v976, %v1079
        %v1081 = vpop.f32.mrb[0].mxu0
        %1082 = vmatprep.mubr.f32.mxu0 0.0
        %1083 = vmatmul.mubr.f32.gmra.mrb[0].mxu0 %v947
        %v1084 = vpop.f32.mrb[0].mxu0
        %v1085 = vadd.f32 %v976, %v1084
        %v1086 = vpop.f32.mrb[0].mxu0
        %1087 = vmatprep.mubr.f32.mxu0 0.0
        %1088 = vmatmul.mubr.f32.gmra.mrb[0].mxu0 %v948
        %v1089 = vpop.f32.mrb[0].mxu0
        %v1090 = vadd.f32 %v976, %v1089
        %v1091 = vpop.f32.mrb[0].mxu0
        %1092 = vmatprep.mubr.f32.mxu0 0.0
        %1093 = vmatmul.mubr.f32.gmra.mrb[0].mxu0 %v949
        %v1094 = vpop.f32.mrb[0].mxu0
        %v1095 = vadd.f32 %v976, %v1094
        %v1096 = vpop.f32.mrb[0].mxu0
        %1097 = vmatprep.mubr.f32.mxu0 0.0
        %1098 = vmatmul.mubr.f32.gmra.mrb[0].mxu0 %v950
        %v1099 = vpop.f32.mrb[0].mxu0
        %v1100 = vadd.f32 %v976, %v1099
        %v1101 = vpop.f32.mrb[0].mxu0
        %1102 = vmatprep.mubr.f32.mxu0 0.0
        %1103 = vmatmul.mubr.f32.gmra.mrb[0].mxu0 %v951
        %v1104 = vpop.f32.mrb[0].mxu0
        %v1105 = vadd.f32 %v976, %v1104
        %v1106 = vpop.f32.mrb[0].mxu0
        %1107 = vmatprep.mubr.f32.mxu0 0.0
        %1108 = vmatmul.mubr.f32.gmra.mrb[0].mxu0 %v952
        %v1109 = vpop.f32.mrb[0].mxu0
        %v1110 = vadd.f32 %v976, %v1109
        %v1111 = vpop.f32.mrb[0].mxu0
        %1112 = vmatprep.mubr.f32.mxu0 0.0
        %1113 = vmatmul.mubr.f32.gmra.mrb[0].mxu0 %v953
        %v1114 = vpop.f32.mrb[0].mxu0
        %v1115 = vadd.f32 %v976, %v1114
        %v1116 = vpop.f32.mrb[0].mxu0
        %1117 = vmatprep.mubr.f32.mxu0 0.0
        %1118 = vmatmul.mubr.f32.gmra.mrb[0].mxu0 %v954
        %v1119 = vpop.f32.mrb[0].mxu0
        %v1120 = vadd.f32 %v976, %v1119
        %v1121 = vpop.f32.mrb[0].mxu0
        %1122 = vdwg.mxu0
        %v1123 = vld [vmem:[%s707] sm:$0xff]
        %v1124 = vld [vmem:[%s707 + $0x8] sm:$0xff]
        %v1125 = vld [vmem:[%s707 + $0x10] sm:$0xff]
        %v1126 = vld [vmem:[%s707 + $0x18] sm:$0xff]
        %v1127 = vld [vmem:[%s707 + $0x20] sm:$0xff]
        %v1128 = vld [vmem:[%s707 + $0x28] sm:$0xff]
        %v1129 = vld [vmem:[%s707 + $0x30] sm:$0xff]
        %v1130 = vld [vmem:[%s707 + $0x38] sm:$0xff]
        %v1131 = vld [vmem:[%s707 + $0x40] sm:$0xff]
        %v1132 = vld [vmem:[%s707 + $0x48] sm:$0xff]
        %v1133 = vld [vmem:[%s707 + $0x50] sm:$0xff]
        %v1134 = vld [vmem:[%s707 + $0x58] sm:$0xff]
        %v1135 = vld [vmem:[%s707 + $0x60] sm:$0xff]
        %v1136 = vld [vmem:[%s707 + $0x68] sm:$0xff]
        %v1137 = vld [vmem:[%s707 + $0x70] sm:$0xff]
        %v1138 = vld [vmem:[%s707 + $0x78] sm:$0xff]
        %v1139 = vld [vmem:[%s10] sm:$0x1]
        %1141 = vset.pattern.permute.xlu0 0
        %1142 = vperm.xlu0 %1141, %v1123
        %v1143 = vpop.permute.xlu0 %1142
        %1146 = vset.pattern.permute.xlu0 0
        %1147 = vperm.xlu0 %1146, %v1124
        %v1148 = vpop.permute.xlu0 %1147
        %1151 = vset.pattern.permute.xlu0 0
        %1152 = vperm.xlu0 %1151, %v1125
        %v1153 = vpop.permute.xlu0 %1152
        %1156 = vset.pattern.permute.xlu0 0
        %1157 = vperm.xlu0 %1156, %v1126
        %v1158 = vpop.permute.xlu0 %1157
        %1161 = vset.pattern.permute.xlu0 0
        %1162 = vperm.xlu0 %1161, %v1127
        %v1163 = vpop.permute.xlu0 %1162
        %1166 = vset.pattern.permute.xlu0 0
        %1167 = vperm.xlu0 %1166, %v1128
        %v1168 = vpop.permute.xlu0 %1167
        %1171 = vset.pattern.permute.xlu0 0
        %1172 = vperm.xlu0 %1171, %v1129
        %v1173 = vpop.permute.xlu0 %1172
        %1176 = vset.pattern.permute.xlu0 0
        %1177 = vperm.xlu0 %1176, %v1130
        %v1178 = vpop.permute.xlu0 %1177
        %1181 = vset.pattern.permute.xlu0 0
        %1182 = vperm.xlu0 %1181, %v1131
        %v1183 = vpop.permute.xlu0 %1182
        %1186 = vset.pattern.permute.xlu0 0
        %1187 = vperm.xlu0 %1186, %v1132
        %v1188 = vpop.permute.xlu0 %1187
        %1191 = vset.pattern.permute.xlu0 0
        %1192 = vperm.xlu0 %1191, %v1133
        %v1193 = vpop.permute.xlu0 %1192
        %1196 = vset.pattern.permute.xlu0 0
        %1197 = vperm.xlu0 %1196, %v1134
        %v1198 = vpop.permute.xlu0 %1197
        %1201 = vset.pattern.permute.xlu0 0
        %1202 = vperm.xlu0 %1201, %v1135
        %v1203 = vpop.permute.xlu0 %1202
        %1206 = vset.pattern.permute.xlu0 0
        %1207 = vperm.xlu0 %1206, %v1136
        %v1208 = vpop.permute.xlu0 %1207
        %1211 = vset.pattern.permute.xlu0 0
        %1212 = vperm.xlu0 %1211, %v1137
        %v1213 = vpop.permute.xlu0 %1212
        %1216 = vset.pattern.permute.xlu0 0
        %1217 = vperm.xlu0 %1216, %v1138
        %v1218 = vpop.permute.xlu0 %1217
        %v1221 = vlaneseq
        %v1222 = vshrl.u32 %v1221, 7
        %v1223 = vsub.s32 0, %v1222
        %v1224 = vrot.slane %v1139, %v1223
        %v1226 = vmul.f32 %v1143, %v1224
        %v1227 = vmul.f32 %v1148, %v1224
        %v1228 = vmul.f32 %v1153, %v1224
        %v1229 = vmul.f32 %v1158, %v1224
        %v1230 = vmul.f32 %v1163, %v1224
        %v1231 = vmul.f32 %v1168, %v1224
        %v1232 = vmul.f32 %v1173, %v1224
        %v1233 = vmul.f32 %v1178, %v1224
        %v1234 = vmul.f32 %v1183, %v1224
        %v1235 = vmul.f32 %v1188, %v1224
        %v1236 = vmul.f32 %v1193, %v1224
        %v1237 = vmul.f32 %v1198, %v1224
        %v1238 = vmul.f32 %v1203, %v1224
        %v1239 = vmul.f32 %v1208, %v1224
        %v1240 = vmul.f32 %v1213, %v1224
        %v1241 = vmul.f32 %v1218, %v1224
        %v1242 = vld [vmem:[%s11] sm:$0x1]
        %v1244 = vlaneseq
        %v1245 = vshrl.u32 %v1244, 7
        %v1246 = vsub.s32 0, %v1245
        %v1247 = vrot.slane %v1242, %v1246
        %v1249 = vadd.f32 %v1226, %v1247
        %v1250 = vadd.f32 %v1227, %v1247
        %v1251 = vadd.f32 %v1228, %v1247
        %v1252 = vadd.f32 %v1229, %v1247
        %v1253 = vadd.f32 %v1230, %v1247
        %v1254 = vadd.f32 %v1231, %v1247
        %v1255 = vadd.f32 %v1232, %v1247
        %v1256 = vadd.f32 %v1233, %v1247
        %v1257 = vadd.f32 %v1234, %v1247
        %v1258 = vadd.f32 %v1235, %v1247
        %v1259 = vadd.f32 %v1236, %v1247
        %v1260 = vadd.f32 %v1237, %v1247
        %v1261 = vadd.f32 %v1238, %v1247
        %v1262 = vadd.f32 %v1239, %v1247
        %v1263 = vadd.f32 %v1240, %v1247
        %v1264 = vadd.f32 %v1241, %v1247
        %v1265 = vxor.u32 %v1249, 2147483648
        %v1266 = vxor.u32 %v1250, 2147483648
        %v1267 = vxor.u32 %v1251, 2147483648
        %v1268 = vxor.u32 %v1252, 2147483648
        %v1269 = vxor.u32 %v1253, 2147483648
        %v1270 = vxor.u32 %v1254, 2147483648
        %v1271 = vxor.u32 %v1255, 2147483648
        %v1272 = vxor.u32 %v1256, 2147483648
        %v1273 = vxor.u32 %v1257, 2147483648
        %v1274 = vxor.u32 %v1258, 2147483648
        %v1275 = vxor.u32 %v1259, 2147483648
        %v1276 = vxor.u32 %v1260, 2147483648
        %v1277 = vxor.u32 %v1261, 2147483648
        %v1278 = vxor.u32 %v1262, 2147483648
        %v1279 = vxor.u32 %v1263, 2147483648
        %v1280 = vxor.u32 %v1264, 2147483648
        %v1281 = vmul.f32 %v1265, 1.442695
        %v1282 = vpow.pop %v1281
        %v1283 = vmul.f32 %v1266, 1.442695
        %v1284 = vpow.pop %v1283
        %v1285 = vmul.f32 %v1267, 1.442695
        %v1286 = vpow.pop %v1285
        %v1287 = vmul.f32 %v1268, 1.442695
        %v1288 = vpow.pop %v1287
        %v1289 = vmul.f32 %v1269, 1.442695
        %v1290 = vpow.pop %v1289
        %v1291 = vmul.f32 %v1270, 1.442695
        %v1292 = vpow.pop %v1291
        %v1293 = vmul.f32 %v1271, 1.442695
        %v1294 = vpow.pop %v1293
        %v1295 = vmul.f32 %v1272, 1.442695
        %v1296 = vpow.pop %v1295
        %v1297 = vmul.f32 %v1273, 1.442695
        %v1298 = vpow.pop %v1297
        %v1299 = vmul.f32 %v1274, 1.442695
        %v1300 = vpow.pop %v1299
        %v1301 = vmul.f32 %v1275, 1.442695
        %v1302 = vpow.pop %v1301
        %v1303 = vmul.f32 %v1276, 1.442695
        %v1304 = vpow.pop %v1303
        %v1305 = vmul.f32 %v1277, 1.442695
        %v1306 = vpow.pop %v1305
        %v1307 = vmul.f32 %v1278, 1.442695
        %v1308 = vpow.pop %v1307
        %v1309 = vmul.f32 %v1279, 1.442695
        %v1310 = vpow.pop %v1309
        %v1311 = vmul.f32 %v1280, 1.442695
        %v1312 = vpow.pop %v1311
        %v1313 = vadd.f32 %v1282, 1.0
        %v1314 = vadd.f32 %v1284, 1.0
        %v1315 = vadd.f32 %v1286, 1.0
        %v1316 = vadd.f32 %v1288, 1.0
        %v1317 = vadd.f32 %v1290, 1.0
        %v1318 = vadd.f32 %v1292, 1.0
        %v1319 = vadd.f32 %v1294, 1.0
        %v1320 = vadd.f32 %v1296, 1.0
        %v1321 = vadd.f32 %v1298, 1.0
        %v1322 = vadd.f32 %v1300, 1.0
        %v1323 = vadd.f32 %v1302, 1.0
        %v1324 = vadd.f32 %v1304, 1.0
        %v1325 = vadd.f32 %v1306, 1.0
        %v1326 = vadd.f32 %v1308, 1.0
        %v1327 = vadd.f32 %v1310, 1.0
        %v1328 = vadd.f32 %v1312, 1.0
        %v1329 = vrcp.pop %v1313
        %v1330 = vmul.f32 1.0, %v1329
        %v1331 = vrcp.pop %v1314
        %v1332 = vmul.f32 1.0, %v1331
        %v1333 = vrcp.pop %v1315
        %v1334 = vmul.f32 1.0, %v1333
        %v1335 = vrcp.pop %v1316
        %v1336 = vmul.f32 1.0, %v1335
        %v1337 = vrcp.pop %v1317
        %v1338 = vmul.f32 1.0, %v1337
        %v1339 = vrcp.pop %v1318
        %v1340 = vmul.f32 1.0, %v1339
        %v1341 = vrcp.pop %v1319
        %v1342 = vmul.f32 1.0, %v1341
        %v1343 = vrcp.pop %v1320
        %v1344 = vmul.f32 1.0, %v1343
        %v1345 = vrcp.pop %v1321
        %v1346 = vmul.f32 1.0, %v1345
        %v1347 = vrcp.pop %v1322
        %v1348 = vmul.f32 1.0, %v1347
        %v1349 = vrcp.pop %v1323
        %v1350 = vmul.f32 1.0, %v1349
        %v1351 = vrcp.pop %v1324
        %v1352 = vmul.f32 1.0, %v1351
        %v1353 = vrcp.pop %v1325
        %v1354 = vmul.f32 1.0, %v1353
        %v1355 = vrcp.pop %v1326
        %v1356 = vmul.f32 1.0, %v1355
        %v1357 = vrcp.pop %v1327
        %v1358 = vmul.f32 1.0, %v1357
        %v1359 = vrcp.pop %v1328
        %v1360 = vmul.f32 1.0, %v1359
        %v1361 = vmul.f32 %v1045, %v1330
        %v1362 = vmul.f32 %v1050, %v1332
        %v1363 = vmul.f32 %v1055, %v1334
        %v1364 = vmul.f32 %v1060, %v1336
        %v1365 = vmul.f32 %v1065, %v1338
        %v1366 = vmul.f32 %v1070, %v1340
        %v1367 = vmul.f32 %v1075, %v1342
        %v1368 = vmul.f32 %v1080, %v1344
        %v1369 = vmul.f32 %v1085, %v1346
        %v1370 = vmul.f32 %v1090, %v1348
        %v1371 = vmul.f32 %v1095, %v1350
        %v1372 = vmul.f32 %v1100, %v1352
        %v1373 = vmul.f32 %v1105, %v1354
        %v1374 = vmul.f32 %v1110, %v1356
        %v1375 = vmul.f32 %v1115, %v1358
        %v1376 = vmul.f32 %v1120, %v1360
        %v1377 = vlaneseq
        %v1378 = vand.u32 %v1377, 127
        %v1379 = vadd.s32 %v1378, 128
        %v1380 = vld [vmem:[%s713] sm:$0xff]
        %v1381 = vld [vmem:[%s713 + $0x8] sm:$0xff]
        %v1382 = vld [vmem:[%s713 + $0x10] sm:$0xff]
        %v1383 = vld [vmem:[%s713 + $0x18] sm:$0xff]
        %v1384 = vld [vmem:[%s713 + $0x20] sm:$0xff]
        %v1385 = vld [vmem:[%s713 + $0x28] sm:$0xff]
        %v1386 = vld [vmem:[%s713 + $0x30] sm:$0xff]
        %v1387 = vld [vmem:[%s713 + $0x38] sm:$0xff]
        %v1388 = vld [vmem:[%s713 + $0x40] sm:$0xff]
        %v1389 = vld [vmem:[%s713 + $0x48] sm:$0xff]
        %v1390 = vld [vmem:[%s713 + $0x50] sm:$0xff]
        %v1391 = vld [vmem:[%s713 + $0x58] sm:$0xff]
        %v1392 = vld [vmem:[%s713 + $0x60] sm:$0xff]
        %v1393 = vld [vmem:[%s713 + $0x68] sm:$0xff]
        %v1394 = vld [vmem:[%s713 + $0x70] sm:$0xff]
        %v1395 = vld [vmem:[%s713 + $0x78] sm:$0xff]
        %1396 = vset.pattern.permute.xlu0 0
        %1397 = vperm.xlu0 %1396, %v1380
        %v1398 = vpop.permute.xlu0 %1397
        %1399 = vset.pattern.permute.xlu0 0
        %1400 = vperm.xlu0 %1399, %v1381
        %v1401 = vpop.permute.xlu0 %1400
        %1402 = vset.pattern.permute.xlu0 0
        %1403 = vperm.xlu0 %1402, %v1382
        %v1404 = vpop.permute.xlu0 %1403
        %1405 = vset.pattern.permute.xlu0 0
        %1406 = vperm.xlu0 %1405, %v1383
        %v1407 = vpop.permute.xlu0 %1406
        %1408 = vset.pattern.permute.xlu0 0
        %1409 = vperm.xlu0 %1408, %v1384
        %v1410 = vpop.permute.xlu0 %1409
        %1411 = vset.pattern.permute.xlu0 0
        %1412 = vperm.xlu0 %1411, %v1385
        %v1413 = vpop.permute.xlu0 %1412
        %1414 = vset.pattern.permute.xlu0 0
        %1415 = vperm.xlu0 %1414, %v1386
        %v1416 = vpop.permute.xlu0 %1415
        %1417 = vset.pattern.permute.xlu0 0
        %1418 = vperm.xlu0 %1417, %v1387
        %v1419 = vpop.permute.xlu0 %1418
        %1420 = vset.pattern.permute.xlu0 0
        %1421 = vperm.xlu0 %1420, %v1388
        %v1422 = vpop.permute.xlu0 %1421
        %1423 = vset.pattern.permute.xlu0 0
        %1424 = vperm.xlu0 %1423, %v1389
        %v1425 = vpop.permute.xlu0 %1424
        %1426 = vset.pattern.permute.xlu0 0
        %1427 = vperm.xlu0 %1426, %v1390
        %v1428 = vpop.permute.xlu0 %1427
        %1429 = vset.pattern.permute.xlu0 0
        %1430 = vperm.xlu0 %1429, %v1391
        %v1431 = vpop.permute.xlu0 %1430
        %1432 = vset.pattern.permute.xlu0 0
        %1433 = vperm.xlu0 %1432, %v1392
        %v1434 = vpop.permute.xlu0 %1433
        %1435 = vset.pattern.permute.xlu0 0
        %1436 = vperm.xlu0 %1435, %v1393
        %v1437 = vpop.permute.xlu0 %1436
        %1438 = vset.pattern.permute.xlu0 0
        %1439 = vperm.xlu0 %1438, %v1394
        %v1440 = vpop.permute.xlu0 %1439
        %1441 = vset.pattern.permute.xlu0 0
        %1442 = vperm.xlu0 %1441, %v1395
        %v1443 = vpop.permute.xlu0 %1442
        %vm1444 = vcmp.eq.s32.totalorder %v1378, %v1398
        %vm1445 = vcmp.eq.s32.totalorder %v1379, %v1398
        %vm1446 = vcmp.eq.s32.totalorder %v1378, %v1401
        %vm1447 = vcmp.eq.s32.totalorder %v1379, %v1401
        %vm1448 = vcmp.eq.s32.totalorder %v1378, %v1404
        %vm1449 = vcmp.eq.s32.totalorder %v1379, %v1404
        %vm1450 = vcmp.eq.s32.totalorder %v1378, %v1407
        %vm1451 = vcmp.eq.s32.totalorder %v1379, %v1407
        %vm1452 = vcmp.eq.s32.totalorder %v1378, %v1410
        %vm1453 = vcmp.eq.s32.totalorder %v1379, %v1410
        %vm1454 = vcmp.eq.s32.totalorder %v1378, %v1413
        %vm1455 = vcmp.eq.s32.totalorder %v1379, %v1413
        %vm1456 = vcmp.eq.s32.totalorder %v1378, %v1416
        %vm1457 = vcmp.eq.s32.totalorder %v1379, %v1416
        %vm1458 = vcmp.eq.s32.totalorder %v1378, %v1419
        %vm1459 = vcmp.eq.s32.totalorder %v1379, %v1419
        %vm1460 = vcmp.eq.s32.totalorder %v1378, %v1422
        %vm1461 = vcmp.eq.s32.totalorder %v1379, %v1422
        %vm1462 = vcmp.eq.s32.totalorder %v1378, %v1425
        %vm1463 = vcmp.eq.s32.totalorder %v1379, %v1425
        %vm1464 = vcmp.eq.s32.totalorder %v1378, %v1428
        %vm1465 = vcmp.eq.s32.totalorder %v1379, %v1428
        %vm1466 = vcmp.eq.s32.totalorder %v1378, %v1431
        %vm1467 = vcmp.eq.s32.totalorder %v1379, %v1431
        %vm1468 = vcmp.eq.s32.totalorder %v1378, %v1434
        %vm1469 = vcmp.eq.s32.totalorder %v1379, %v1434
        %vm1470 = vcmp.eq.s32.totalorder %v1378, %v1437
        %vm1471 = vcmp.eq.s32.totalorder %v1379, %v1437
        %vm1472 = vcmp.eq.s32.totalorder %v1378, %v1440
        %vm1473 = vcmp.eq.s32.totalorder %v1379, %v1440
        %vm1474 = vcmp.eq.s32.totalorder %v1378, %v1443
        %vm1475 = vcmp.eq.s32.totalorder %v1379, %v1443
        %v1476 = vsel %vm1444, 1, 0
        %v1477 = vsel %vm1445, 1, 0
        %v1478 = vsel %vm1446, 1, 0
        %v1479 = vsel %vm1447, 1, 0
        %v1480 = vsel %vm1448, 1, 0
        %v1481 = vsel %vm1449, 1, 0
        %v1482 = vsel %vm1450, 1, 0
        %v1483 = vsel %vm1451, 1, 0
        %v1484 = vsel %vm1452, 1, 0
        %v1485 = vsel %vm1453, 1, 0
        %v1486 = vsel %vm1454, 1, 0
        %v1487 = vsel %vm1455, 1, 0
        %v1488 = vsel %vm1456, 1, 0
        %v1489 = vsel %vm1457, 1, 0
        %v1490 = vsel %vm1458, 1, 0
        %v1491 = vsel %vm1459, 1, 0
        %v1492 = vsel %vm1460, 1, 0
        %v1493 = vsel %vm1461, 1, 0
        %v1494 = vsel %vm1462, 1, 0
        %v1495 = vsel %vm1463, 1, 0
        %v1496 = vsel %vm1464, 1, 0
        %v1497 = vsel %vm1465, 1, 0
        %v1498 = vsel %vm1466, 1, 0
        %v1499 = vsel %vm1467, 1, 0
        %v1500 = vsel %vm1468, 1, 0
        %v1501 = vsel %vm1469, 1, 0
        %v1502 = vsel %vm1470, 1, 0
        %v1503 = vsel %vm1471, 1, 0
        %v1504 = vsel %vm1472, 1, 0
        %v1505 = vsel %vm1473, 1, 0
        %v1506 = vsel %vm1474, 1, 0
        %v1507 = vsel %vm1475, 1, 0
        %v1508 = vcvt.s32.f32 %v1476
        %v1509 = vcvt.s32.f32 %v1477
        %v1510 = vcvt.s32.f32 %v1478
        %v1511 = vcvt.s32.f32 %v1479
        %v1512 = vcvt.s32.f32 %v1480
        %v1513 = vcvt.s32.f32 %v1481
        %v1514 = vcvt.s32.f32 %v1482
        %v1515 = vcvt.s32.f32 %v1483
        %v1516 = vcvt.s32.f32 %v1484
        %v1517 = vcvt.s32.f32 %v1485
        %v1518 = vcvt.s32.f32 %v1486
        %v1519 = vcvt.s32.f32 %v1487
        %v1520 = vcvt.s32.f32 %v1488
        %v1521 = vcvt.s32.f32 %v1489
        %v1522 = vcvt.s32.f32 %v1490
        %v1523 = vcvt.s32.f32 %v1491
        %v1524 = vcvt.s32.f32 %v1492
        %v1525 = vcvt.s32.f32 %v1493
        %v1526 = vcvt.s32.f32 %v1494
        %v1527 = vcvt.s32.f32 %v1495
        %v1528 = vcvt.s32.f32 %v1496
        %v1529 = vcvt.s32.f32 %v1497
        %v1530 = vcvt.s32.f32 %v1498
        %v1531 = vcvt.s32.f32 %v1499
        %v1532 = vcvt.s32.f32 %v1500
        %v1533 = vcvt.s32.f32 %v1501
        %v1534 = vcvt.s32.f32 %v1502
        %v1535 = vcvt.s32.f32 %v1503
        %v1536 = vcvt.s32.f32 %v1504
        %v1537 = vcvt.s32.f32 %v1505
        %v1538 = vcvt.s32.f32 %v1506
        %v1539 = vcvt.s32.f32 %v1507
        %v1540 = vld [vmem:[%s0] sm:$0xff]
        %v1541 = vld [vmem:[%s0 + $0x8] sm:$0xff]
        %v1542 = vld [vmem:[%s0 + $0x10] sm:$0xff]
        %v1543 = vld [vmem:[%s0 + $0x18] sm:$0xff]
        %v1544 = vld [vmem:[%s0 + $0x20] sm:$0xff]
        %v1545 = vld [vmem:[%s0 + $0x28] sm:$0xff]
        %v1546 = vld [vmem:[%s0 + $0x30] sm:$0xff]
        %v1547 = vld [vmem:[%s0 + $0x38] sm:$0xff]
        %v1548 = vld [vmem:[%s0 + $0x40] sm:$0xff]
        %v1549 = vld [vmem:[%s0 + $0x48] sm:$0xff]
        %v1550 = vld [vmem:[%s0 + $0x50] sm:$0xff]
        %v1551 = vld [vmem:[%s0 + $0x58] sm:$0xff]
        %v1552 = vld [vmem:[%s0 + $0x60] sm:$0xff]
        %v1553 = vld [vmem:[%s0 + $0x68] sm:$0xff]
        %v1554 = vld [vmem:[%s0 + $0x70] sm:$0xff]
        %v1555 = vld [vmem:[%s0 + $0x78] sm:$0xff]
        %v1556 = vld [vmem:[%s0 + $0x80] sm:$0xff]
        %v1557 = vld [vmem:[%s0 + $0x88] sm:$0xff]
        %v1558 = vld [vmem:[%s0 + $0x90] sm:$0xff]
        %v1559 = vld [vmem:[%s0 + $0x98] sm:$0xff]
        %v1560 = vld [vmem:[%s0 + $0xa0] sm:$0xff]
        %v1561 = vld [vmem:[%s0 + $0xa8] sm:$0xff]
        %v1562 = vld [vmem:[%s0 + $0xb0] sm:$0xff]
        %v1563 = vld [vmem:[%s0 + $0xb8] sm:$0xff]
        %v1564 = vld [vmem:[%s0 + $0xc0] sm:$0xff]
        %v1565 = vld [vmem:[%s0 + $0xc8] sm:$0xff]
        %v1566 = vld [vmem:[%s0 + $0xd0] sm:$0xff]
        %v1567 = vld [vmem:[%s0 + $0xd8] sm:$0xff]
        %v1568 = vld [vmem:[%s0 + $0xe0] sm:$0xff]
        %v1569 = vld [vmem:[%s0 + $0xe8] sm:$0xff]
        %v1570 = vld [vmem:[%s0 + $0xf0] sm:$0xff]
        %v1571 = vld [vmem:[%s0 + $0xf8] sm:$0xff]
        %1572 = vmatprep.subr.mxu0 0.0
        %1573 = vmatpush1.msra.mxu0 %v1540
        %1574 = vmatprep.subr.mxu0 0.0
        %1575 = vmatpush1.msra.mxu0 %v1541
        %1576 = vmatprep.subr.mxu0 0.0
        %1577 = vmatpush1.msra.mxu0 %v1542
        %1578 = vmatprep.subr.mxu0 0.0
        %1579 = vmatpush1.msra.mxu0 %v1543
        %1580 = vmatprep.subr.mxu0 0.0
        %1581 = vmatpush1.msra.mxu0 %v1544
        %1582 = vmatprep.subr.mxu0 0.0
        %1583 = vmatpush1.msra.mxu0 %v1545
        %1584 = vmatprep.subr.mxu0 0.0
        %1585 = vmatpush1.msra.mxu0 %v1546
        %1586 = vmatprep.subr.mxu0 0.0
        %1587 = vmatpush1.msra.mxu0 %v1547
        %1588 = vmatprep.subr.mxu0 0.0
        %1589 = vmatpush1.msra.mxu0 %v1548
        %1590 = vmatprep.subr.mxu0 0.0
        %1591 = vmatpush1.msra.mxu0 %v1549
        %1592 = vmatprep.subr.mxu0 0.0
        %1593 = vmatpush1.msra.mxu0 %v1550
        %1594 = vmatprep.subr.mxu0 0.0
        %1595 = vmatpush1.msra.mxu0 %v1551
        %1596 = vmatprep.subr.mxu0 0.0
        %1597 = vmatpush1.msra.mxu0 %v1552
        %1598 = vmatprep.subr.mxu0 0.0
        %1599 = vmatpush1.msra.mxu0 %v1553
        %1600 = vmatprep.subr.mxu0 0.0
        %1601 = vmatpush1.msra.mxu0 %v1554
        %1602 = vmatprep.subr.mxu0 0.0
        %1603 = vmatpush1.msra.mxu0 %v1555
        %1604 = vmatprep.subr.mxu0 0.0
        %1605 = vmatpush1.msra.mxu0 %v1556
        %1606 = vmatprep.subr.mxu0 0.0
        %1607 = vmatpush1.msra.mxu0 %v1557
        %1608 = vmatprep.subr.mxu0 0.0
        %1609 = vmatpush1.msra.mxu0 %v1558
        %1610 = vmatprep.subr.mxu0 0.0
        %1611 = vmatpush1.msra.mxu0 %v1559
        %1612 = vmatprep.subr.mxu0 0.0
        %1613 = vmatpush1.msra.mxu0 %v1560
        %1614 = vmatprep.subr.mxu0 0.0
        %1615 = vmatpush1.msra.mxu0 %v1561
        %1616 = vmatprep.subr.mxu0 0.0
        %1617 = vmatpush1.msra.mxu0 %v1562
        %1618 = vmatprep.subr.mxu0 0.0
        %1619 = vmatpush1.msra.mxu0 %v1563
        %1620 = vmatprep.subr.mxu0 0.0
        %1621 = vmatpush1.msra.mxu0 %v1564
        %1622 = vmatprep.subr.mxu0 0.0
        %1623 = vmatpush1.msra.mxu0 %v1565
        %1624 = vmatprep.subr.mxu0 0.0
        %1625 = vmatpush1.msra.mxu0 %v1566
        %1626 = vmatprep.subr.mxu0 0.0
        %1627 = vmatpush1.msra.mxu0 %v1567
        %1628 = vmatprep.subr.mxu0 0.0
        %1629 = vmatpush1.msra.mxu0 %v1568
        %1630 = vmatprep.subr.mxu0 0.0
        %1631 = vmatpush1.msra.mxu0 %v1569
        %1632 = vmatprep.subr.mxu0 0.0
        %1633 = vmatpush1.msra.mxu0 %v1570
        %1634 = vmatprep.subr.mxu0 0.0
        %1635 = vmatpush1.msra.mxu0 %v1571
        %1636 = vmatprep.mubr.f32.mxu0 %v1509
        %1637 = vmatmul.mubr.f32.gmra.mrb[0].mxu0 %v1508
        %v1638 = vpop.f32.mrb[0].mxu0
        %v1639 = vadd.f32 0.0, %v1638
        %v1640 = vpop.f32.mrb[0].mxu0
        %1641 = vmatprep.mubr.f32.mxu0 %v1511
        %1642 = vmatmul.mubr.f32.gmra.mrb[0].mxu0 %v1510
        %v1643 = vpop.f32.mrb[0].mxu0
        %v1644 = vadd.f32 0.0, %v1643
        %v1645 = vpop.f32.mrb[0].mxu0
        %1646 = vmatprep.mubr.f32.mxu0 %v1513
        %1647 = vmatmul.mubr.f32.gmra.mrb[0].mxu0 %v1512
        %v1648 = vpop.f32.mrb[0].mxu0
        %v1649 = vadd.f32 0.0, %v1648
        %v1650 = vpop.f32.mrb[0].mxu0
        %1651 = vmatprep.mubr.f32.mxu0 %v1515
        %1652 = vmatmul.mubr.f32.gmra.mrb[0].mxu0 %v1514
        %v1653 = vpop.f32.mrb[0].mxu0
        %v1654 = vadd.f32 0.0, %v1653
        %v1655 = vpop.f32.mrb[0].mxu0
        %1656 = vmatprep.mubr.f32.mxu0 %v1517
        %1657 = vmatmul.mubr.f32.gmra.mrb[0].mxu0 %v1516
        %v1658 = vpop.f32.mrb[0].mxu0
        %v1659 = vadd.f32 0.0, %v1658
        %v1660 = vpop.f32.mrb[0].mxu0
        %1661 = vmatprep.mubr.f32.mxu0 %v1519
        %1662 = vmatmul.mubr.f32.gmra.mrb[0].mxu0 %v1518
        %v1663 = vpop.f32.mrb[0].mxu0
        %v1664 = vadd.f32 0.0, %v1663
        %v1665 = vpop.f32.mrb[0].mxu0
        %1666 = vmatprep.mubr.f32.mxu0 %v1521
        %1667 = vmatmul.mubr.f32.gmra.mrb[0].mxu0 %v1520
        %v1668 = vpop.f32.mrb[0].mxu0
        %v1669 = vadd.f32 0.0, %v1668
        %v1670 = vpop.f32.mrb[0].mxu0
        %1671 = vmatprep.mubr.f32.mxu0 %v1523
        %1672 = vmatmul.mubr.f32.gmra.mrb[0].mxu0 %v1522
        %v1673 = vpop.f32.mrb[0].mxu0
        %v1674 = vadd.f32 0.0, %v1673
        %v1675 = vpop.f32.mrb[0].mxu0
        %1676 = vmatprep.mubr.f32.mxu0 %v1525
        %1677 = vmatmul.mubr.f32.gmra.mrb[0].mxu0 %v1524
        %v1678 = vpop.f32.mrb[0].mxu0
        %v1679 = vadd.f32 0.0, %v1678
        %v1680 = vpop.f32.mrb[0].mxu0
        %1681 = vmatprep.mubr.f32.mxu0 %v1527
        %1682 = vmatmul.mubr.f32.gmra.mrb[0].mxu0 %v1526
        %v1683 = vpop.f32.mrb[0].mxu0
        %v1684 = vadd.f32 0.0, %v1683
        %v1685 = vpop.f32.mrb[0].mxu0
        %1686 = vmatprep.mubr.f32.mxu0 %v1529
        %1687 = vmatmul.mubr.f32.gmra.mrb[0].mxu0 %v1528
        %v1688 = vpop.f32.mrb[0].mxu0
        %v1689 = vadd.f32 0.0, %v1688
        %v1690 = vpop.f32.mrb[0].mxu0
        %1691 = vmatprep.mubr.f32.mxu0 %v1531
        %1692 = vmatmul.mubr.f32.gmra.mrb[0].mxu0 %v1530
        %v1693 = vpop.f32.mrb[0].mxu0
        %v1694 = vadd.f32 0.0, %v1693
        %v1695 = vpop.f32.mrb[0].mxu0
        %1696 = vmatprep.mubr.f32.mxu0 %v1533
        %1697 = vmatmul.mubr.f32.gmra.mrb[0].mxu0 %v1532
        %v1698 = vpop.f32.mrb[0].mxu0
        %v1699 = vadd.f32 0.0, %v1698
        %v1700 = vpop.f32.mrb[0].mxu0
        %1701 = vmatprep.mubr.f32.mxu0 %v1535
        %1702 = vmatmul.mubr.f32.gmra.mrb[0].mxu0 %v1534
        %v1703 = vpop.f32.mrb[0].mxu0
        %v1704 = vadd.f32 0.0, %v1703
        %v1705 = vpop.f32.mrb[0].mxu0
        %1706 = vmatprep.mubr.f32.mxu0 %v1537
        %1707 = vmatmul.mubr.f32.gmra.mrb[0].mxu0 %v1536
        %v1708 = vpop.f32.mrb[0].mxu0
        %v1709 = vadd.f32 0.0, %v1708
        %v1710 = vpop.f32.mrb[0].mxu0
        %1711 = vmatprep.mubr.f32.mxu0 %v1539
        %1712 = vmatmul.mubr.f32.gmra.mrb[0].mxu0 %v1538
        %v1713 = vpop.f32.mrb[0].mxu0
        %v1714 = vadd.f32 0.0, %v1713
        %v1715 = vpop.f32.mrb[0].mxu0
        %1716 = vdwg.mxu0
        %v1717 = vld [vmem:[#allocation7] sm:$0xff]
        %v1718 = vld [vmem:[#allocation7 + $0x8] sm:$0xff]
        %v1719 = vld [vmem:[#allocation7 + $0x10] sm:$0xff]
        %v1720 = vld [vmem:[#allocation7 + $0x18] sm:$0xff]
        %v1721 = vld [vmem:[#allocation7 + $0x20] sm:$0xff]
        %v1722 = vld [vmem:[#allocation7 + $0x28] sm:$0xff]
        %v1723 = vld [vmem:[#allocation7 + $0x30] sm:$0xff]
        %v1724 = vld [vmem:[#allocation7 + $0x38] sm:$0xff]
        %v1725 = vld [vmem:[#allocation7 + $0x40] sm:$0xff]
        %v1726 = vld [vmem:[#allocation7 + $0x48] sm:$0xff]
        %v1727 = vld [vmem:[#allocation7 + $0x50] sm:$0xff]
        %v1728 = vld [vmem:[#allocation7 + $0x58] sm:$0xff]
        %v1729 = vld [vmem:[#allocation7 + $0x60] sm:$0xff]
        %v1730 = vld [vmem:[#allocation7 + $0x68] sm:$0xff]
        %v1731 = vld [vmem:[#allocation7 + $0x70] sm:$0xff]
        %v1732 = vld [vmem:[#allocation7 + $0x78] sm:$0xff]
        %v1733 = vld [vmem:[#allocation8] sm:$0xff]
        %v1734 = vld [vmem:[#allocation8 + $0x8] sm:$0xff]
        %v1735 = vld [vmem:[#allocation8 + $0x10] sm:$0xff]
        %v1736 = vld [vmem:[#allocation8 + $0x18] sm:$0xff]
        %v1737 = vld [vmem:[#allocation8 + $0x20] sm:$0xff]
        %v1738 = vld [vmem:[#allocation8 + $0x28] sm:$0xff]
        %v1739 = vld [vmem:[#allocation8 + $0x30] sm:$0xff]
        %v1740 = vld [vmem:[#allocation8 + $0x38] sm:$0xff]
        %v1741 = vld [vmem:[#allocation8 + $0x40] sm:$0xff]
        %v1742 = vld [vmem:[#allocation8 + $0x48] sm:$0xff]
        %v1743 = vld [vmem:[#allocation8 + $0x50] sm:$0xff]
        %v1744 = vld [vmem:[#allocation8 + $0x58] sm:$0xff]
        %v1745 = vld [vmem:[#allocation8 + $0x60] sm:$0xff]
        %v1746 = vld [vmem:[#allocation8 + $0x68] sm:$0xff]
        %v1747 = vld [vmem:[#allocation8 + $0x70] sm:$0xff]
        %v1748 = vld [vmem:[#allocation8 + $0x78] sm:$0xff]
        %1749 = vmatprep.subr.mxu0 0.0
        %1750 = vmatpush1.msra.mxu0 %v1733
        %1751 = vmatprep.subr.mxu0 0.0
        %1752 = vmatpush1.msra.mxu0 %v1734
        %1753 = vmatprep.subr.mxu0 0.0
        %1754 = vmatpush1.msra.mxu0 %v1735
        %1755 = vmatprep.subr.mxu0 0.0
        %1756 = vmatpush1.msra.mxu0 %v1736
        %1757 = vmatprep.subr.mxu0 0.0
        %1758 = vmatpush1.msra.mxu0 %v1737
        %1759 = vmatprep.subr.mxu0 0.0
        %1760 = vmatpush1.msra.mxu0 %v1738
        %1761 = vmatprep.subr.mxu0 0.0
        %1762 = vmatpush1.msra.mxu0 %v1739
        %1763 = vmatprep.subr.mxu0 0.0
        %1764 = vmatpush1.msra.mxu0 %v1740
        %1765 = vmatprep.subr.mxu0 0.0
        %1766 = vmatpush1.msra.mxu0 %v1741
        %1767 = vmatprep.subr.mxu0 0.0
        %1768 = vmatpush1.msra.mxu0 %v1742
        %1769 = vmatprep.subr.mxu0 0.0
        %1770 = vmatpush1.msra.mxu0 %v1743
        %1771 = vmatprep.subr.mxu0 0.0
        %1772 = vmatpush1.msra.mxu0 %v1744
        %1773 = vmatprep.subr.mxu0 0.0
        %1774 = vmatpush1.msra.mxu0 %v1745
        %1775 = vmatprep.subr.mxu0 0.0
        %1776 = vmatpush1.msra.mxu0 %v1746
        %1777 = vmatprep.subr.mxu0 0.0
        %1778 = vmatpush1.msra.mxu0 %v1747
        %1779 = vmatprep.subr.mxu0 0.0
        %1780 = vmatpush1.msra.mxu0 %v1748
        %1781 = vmatprep.subr.mxu0 0.0
        %1782 = vmatpush1.msra.mxu0 0.0
        %1783 = vmatprep.subr.mxu0 0.0
        %1784 = vmatpush1.msra.mxu0 0.0
        %1785 = vmatprep.subr.mxu0 0.0
        %1786 = vmatpush1.msra.mxu0 0.0
        %1787 = vmatprep.subr.mxu0 0.0
        %1788 = vmatpush1.msra.mxu0 0.0
        %1789 = vmatprep.subr.mxu0 0.0
        %1790 = vmatpush1.msra.mxu0 0.0
        %1791 = vmatprep.subr.mxu0 0.0
        %1792 = vmatpush1.msra.mxu0 0.0
        %1793 = vmatprep.subr.mxu0 0.0
        %1794 = vmatpush1.msra.mxu0 0.0
        %1795 = vmatprep.subr.mxu0 0.0
        %1796 = vmatpush1.msra.mxu0 0.0
        %1797 = vmatprep.subr.mxu0 0.0
        %1798 = vmatpush1.msra.mxu0 0.0
        %1799 = vmatprep.subr.mxu0 0.0
        %1800 = vmatpush1.msra.mxu0 0.0
        %1801 = vmatprep.subr.mxu0 0.0
        %1802 = vmatpush1.msra.mxu0 0.0
        %1803 = vmatprep.subr.mxu0 0.0
        %1804 = vmatpush1.msra.mxu0 0.0
        %1805 = vmatprep.subr.mxu0 0.0
        %1806 = vmatpush1.msra.mxu0 0.0
        %1807 = vmatprep.subr.mxu0 0.0
        %1808 = vmatpush1.msra.mxu0 0.0
        %1809 = vmatprep.subr.mxu0 0.0
        %1810 = vmatpush1.msra.mxu0 0.0
        %1811 = vmatprep.subr.mxu0 0.0
        %1812 = vmatpush1.msra.mxu0 0.0
        %1813 = vmatprep.mubr.f32.mxu0 0.0
        %1814 = vmatmul.mubr.f32.gmra.mrb[0].mxu0 %v1361
        %v1815 = vpop.f32.mrb[0].mxu0
        %v1816 = vadd.f32 0.0, %v1815
        %v1817 = vpop.f32.mrb[0].mxu0
        %1818 = vmatprep.mubr.f32.mxu0 0.0
        %1819 = vmatmul.mubr.f32.gmra.mrb[0].mxu0 %v1362
        %v1820 = vpop.f32.mrb[0].mxu0
        %v1821 = vadd.f32 0.0, %v1820
        %v1822 = vpop.f32.mrb[0].mxu0
        %1823 = vmatprep.mubr.f32.mxu0 0.0
        %1824 = vmatmul.mubr.f32.gmra.mrb[0].mxu0 %v1363
        %v1825 = vpop.f32.mrb[0].mxu0
        %v1826 = vadd.f32 0.0, %v1825
        %v1827 = vpop.f32.mrb[0].mxu0
        %1828 = vmatprep.mubr.f32.mxu0 0.0
        %1829 = vmatmul.mubr.f32.gmra.mrb[0].mxu0 %v1364
        %v1830 = vpop.f32.mrb[0].mxu0
        %v1831 = vadd.f32 0.0, %v1830
        %v1832 = vpop.f32.mrb[0].mxu0
        %1833 = vmatprep.mubr.f32.mxu0 0.0
        %1834 = vmatmul.mubr.f32.gmra.mrb[0].mxu0 %v1365
        %v1835 = vpop.f32.mrb[0].mxu0
        %v1836 = vadd.f32 0.0, %v1835
        %v1837 = vpop.f32.mrb[0].mxu0
        %1838 = vmatprep.mubr.f32.mxu0 0.0
        %1839 = vmatmul.mubr.f32.gmra.mrb[0].mxu0 %v1366
        %v1840 = vpop.f32.mrb[0].mxu0
        %v1841 = vadd.f32 0.0, %v1840
        %v1842 = vpop.f32.mrb[0].mxu0
        %1843 = vmatprep.mubr.f32.mxu0 0.0
        %1844 = vmatmul.mubr.f32.gmra.mrb[0].mxu0 %v1367
        %v1845 = vpop.f32.mrb[0].mxu0
        %v1846 = vadd.f32 0.0, %v1845
        %v1847 = vpop.f32.mrb[0].mxu0
        %1848 = vmatprep.mubr.f32.mxu0 0.0
        %1849 = vmatmul.mubr.f32.gmra.mrb[0].mxu0 %v1368
        %v1850 = vpop.f32.mrb[0].mxu0
        %v1851 = vadd.f32 0.0, %v1850
        %v1852 = vpop.f32.mrb[0].mxu0
        %1853 = vmatprep.mubr.f32.mxu0 0.0
        %1854 = vmatmul.mubr.f32.gmra.mrb[0].mxu0 %v1369
        %v1855 = vpop.f32.mrb[0].mxu0
        %v1856 = vadd.f32 0.0, %v1855
        %v1857 = vpop.f32.mrb[0].mxu0
        %1858 = vmatprep.mubr.f32.mxu0 0.0
        %1859 = vmatmul.mubr.f32.gmra.mrb[0].mxu0 %v1370
        %v1860 = vpop.f32.mrb[0].mxu0
        %v1861 = vadd.f32 0.0, %v1860
        %v1862 = vpop.f32.mrb[0].mxu0
        %1863 = vmatprep.mubr.f32.mxu0 0.0
        %1864 = vmatmul.mubr.f32.gmra.mrb[0].mxu0 %v1371
        %v1865 = vpop.f32.mrb[0].mxu0
        %v1866 = vadd.f32 0.0, %v1865
        %v1867 = vpop.f32.mrb[0].mxu0
        %1868 = vmatprep.mubr.f32.mxu0 0.0
        %1869 = vmatmul.mubr.f32.gmra.mrb[0].mxu0 %v1372
        %v1870 = vpop.f32.mrb[0].mxu0
        %v1871 = vadd.f32 0.0, %v1870
        %v1872 = vpop.f32.mrb[0].mxu0
        %1873 = vmatprep.mubr.f32.mxu0 0.0
        %1874 = vmatmul.mubr.f32.gmra.mrb[0].mxu0 %v1373
        %v1875 = vpop.f32.mrb[0].mxu0
        %v1876 = vadd.f32 0.0, %v1875
        %v1877 = vpop.f32.mrb[0].mxu0
        %1878 = vmatprep.mubr.f32.mxu0 0.0
        %1879 = vmatmul.mubr.f32.gmra.mrb[0].mxu0 %v1374
        %v1880 = vpop.f32.mrb[0].mxu0
        %v1881 = vadd.f32 0.0, %v1880
        %v1882 = vpop.f32.mrb[0].mxu0
        %1883 = vmatprep.mubr.f32.mxu0 0.0
        %1884 = vmatmul.mubr.f32.gmra.mrb[0].mxu0 %v1375
        %v1885 = vpop.f32.mrb[0].mxu0
        %v1886 = vadd.f32 0.0, %v1885
        %v1887 = vpop.f32.mrb[0].mxu0
        %1888 = vmatprep.mubr.f32.mxu0 0.0
        %1889 = vmatmul.mubr.f32.gmra.mrb[0].mxu0 %v1376
        %v1890 = vpop.f32.mrb[0].mxu0
        %v1891 = vadd.f32 0.0, %v1890
        %v1892 = vpop.f32.mrb[0].mxu0
        %1893 = vdwg.mxu0
        %1894 = vmatprep.subr.mxu0 0.0
        %1895 = vmatpush1.msra.mxu0 %v1717
        %1896 = vmatprep.subr.mxu0 0.0
        %1897 = vmatpush1.msra.mxu0 %v1718
        %1898 = vmatprep.subr.mxu0 0.0
        %1899 = vmatpush1.msra.mxu0 %v1719
        %1900 = vmatprep.subr.mxu0 0.0
        %1901 = vmatpush1.msra.mxu0 %v1720
        %1902 = vmatprep.subr.mxu0 0.0
        %1903 = vmatpush1.msra.mxu0 %v1721
        %1904 = vmatprep.subr.mxu0 0.0
        %1905 = vmatpush1.msra.mxu0 %v1722
        %1906 = vmatprep.subr.mxu0 0.0
        %1907 = vmatpush1.msra.mxu0 %v1723
        %1908 = vmatprep.subr.mxu0 0.0
        %1909 = vmatpush1.msra.mxu0 %v1724
        %1910 = vmatprep.subr.mxu0 0.0
        %1911 = vmatpush1.msra.mxu0 %v1725
        %1912 = vmatprep.subr.mxu0 0.0
        %1913 = vmatpush1.msra.mxu0 %v1726
        %1914 = vmatprep.subr.mxu0 0.0
        %1915 = vmatpush1.msra.mxu0 %v1727
        %1916 = vmatprep.subr.mxu0 0.0
        %1917 = vmatpush1.msra.mxu0 %v1728
        %1918 = vmatprep.subr.mxu0 0.0
        %1919 = vmatpush1.msra.mxu0 %v1729
        %1920 = vmatprep.subr.mxu0 0.0
        %1921 = vmatpush1.msra.mxu0 %v1730
        %1922 = vmatprep.subr.mxu0 0.0
        %1923 = vmatpush1.msra.mxu0 %v1731
        %1924 = vmatprep.subr.mxu0 0.0
        %1925 = vmatpush1.msra.mxu0 %v1732
        %1926 = vmatprep.subr.mxu0 0.0
        %1927 = vmatpush1.msra.mxu0 0.0
        %1928 = vmatprep.subr.mxu0 0.0
        %1929 = vmatpush1.msra.mxu0 0.0
        %1930 = vmatprep.subr.mxu0 0.0
        %1931 = vmatpush1.msra.mxu0 0.0
        %1932 = vmatprep.subr.mxu0 0.0
        %1933 = vmatpush1.msra.mxu0 0.0
        %1934 = vmatprep.subr.mxu0 0.0
        %1935 = vmatpush1.msra.mxu0 0.0
        %1936 = vmatprep.subr.mxu0 0.0
        %1937 = vmatpush1.msra.mxu0 0.0
        %1938 = vmatprep.subr.mxu0 0.0
        %1939 = vmatpush1.msra.mxu0 0.0
        %1940 = vmatprep.subr.mxu0 0.0
        %1941 = vmatpush1.msra.mxu0 0.0
        %1942 = vmatprep.subr.mxu0 0.0
        %1943 = vmatpush1.msra.mxu0 0.0
        %1944 = vmatprep.subr.mxu0 0.0
        %1945 = vmatpush1.msra.mxu0 0.0
        %1946 = vmatprep.subr.mxu0 0.0
        %1947 = vmatpush1.msra.mxu0 0.0
        %1948 = vmatprep.subr.mxu0 0.0
        %1949 = vmatpush1.msra.mxu0 0.0
        %1950 = vmatprep.subr.mxu0 0.0
        %1951 = vmatpush1.msra.mxu0 0.0
        %1952 = vmatprep.subr.mxu0 0.0
        %1953 = vmatpush1.msra.mxu0 0.0
        %1954 = vmatprep.subr.mxu0 0.0
        %1955 = vmatpush1.msra.mxu0 0.0
        %1956 = vmatprep.subr.mxu0 0.0
        %1957 = vmatpush1.msra.mxu0 0.0
        %1958 = vmatprep.mubr.f32.mxu0 0.0
        %1959 = vmatmul.mubr.f32.gmra.mrb[0].mxu0 %v1639
        %v1960 = vpop.f32.mrb[0].mxu0
        %v1961 = vadd.f32 %v1816, %v1960
        %v1962 = vpop.f32.mrb[0].mxu0
        %1963 = vmatprep.mubr.f32.mxu0 0.0
        %1964 = vmatmul.mubr.f32.gmra.mrb[0].mxu0 %v1644
        %v1965 = vpop.f32.mrb[0].mxu0
        %v1966 = vadd.f32 %v1821, %v1965
        %v1967 = vpop.f32.mrb[0].mxu0
        %1968 = vmatprep.mubr.f32.mxu0 0.0
        %1969 = vmatmul.mubr.f32.gmra.mrb[0].mxu0 %v1649
        %v1970 = vpop.f32.mrb[0].mxu0
        %v1971 = vadd.f32 %v1826, %v1970
        %v1972 = vpop.f32.mrb[0].mxu0
        %1973 = vmatprep.mubr.f32.mxu0 0.0
        %1974 = vmatmul.mubr.f32.gmra.mrb[0].mxu0 %v1654
        %v1975 = vpop.f32.mrb[0].mxu0
        %v1976 = vadd.f32 %v1831, %v1975
        %v1977 = vpop.f32.mrb[0].mxu0
        %1978 = vmatprep.mubr.f32.mxu0 0.0
        %1979 = vmatmul.mubr.f32.gmra.mrb[0].mxu0 %v1659
        %v1980 = vpop.f32.mrb[0].mxu0
        %v1981 = vadd.f32 %v1836, %v1980
        %v1982 = vpop.f32.mrb[0].mxu0
        %1983 = vmatprep.mubr.f32.mxu0 0.0
        %1984 = vmatmul.mubr.f32.gmra.mrb[0].mxu0 %v1664
        %v1985 = vpop.f32.mrb[0].mxu0
        %v1986 = vadd.f32 %v1841, %v1985
        %v1987 = vpop.f32.mrb[0].mxu0
        %1988 = vmatprep.mubr.f32.mxu0 0.0
        %1989 = vmatmul.mubr.f32.gmra.mrb[0].mxu0 %v1669
        %v1990 = vpop.f32.mrb[0].mxu0
        %v1991 = vadd.f32 %v1846, %v1990
        %v1992 = vpop.f32.mrb[0].mxu0
        %1993 = vmatprep.mubr.f32.mxu0 0.0
        %1994 = vmatmul.mubr.f32.gmra.mrb[0].mxu0 %v1674
        %v1995 = vpop.f32.mrb[0].mxu0
        %v1996 = vadd.f32 %v1851, %v1995
        %v1997 = vpop.f32.mrb[0].mxu0
        %1998 = vmatprep.mubr.f32.mxu0 0.0
        %1999 = vmatmul.mubr.f32.gmra.mrb[0].mxu0 %v1679
        %v2000 = vpop.f32.mrb[0].mxu0
        %v2001 = vadd.f32 %v1856, %v2000
        %v2002 = vpop.f32.mrb[0].mxu0
        %2003 = vmatprep.mubr.f32.mxu0 0.0
        %2004 = vmatmul.mubr.f32.gmra.mrb[0].mxu0 %v1684
        %v2005 = vpop.f32.mrb[0].mxu0
        %v2006 = vadd.f32 %v1861, %v2005
        %v2007 = vpop.f32.mrb[0].mxu0
        %2008 = vmatprep.mubr.f32.mxu0 0.0
        %2009 = vmatmul.mubr.f32.gmra.mrb[0].mxu0 %v1689
        %v2010 = vpop.f32.mrb[0].mxu0
        %v2011 = vadd.f32 %v1866, %v2010
        %v2012 = vpop.f32.mrb[0].mxu0
        %2013 = vmatprep.mubr.f32.mxu0 0.0
        %2014 = vmatmul.mubr.f32.gmra.mrb[0].mxu0 %v1694
        %v2015 = vpop.f32.mrb[0].mxu0
        %v2016 = vadd.f32 %v1871, %v2015
        %v2017 = vpop.f32.mrb[0].mxu0
        %2018 = vmatprep.mubr.f32.mxu0 0.0
        %2019 = vmatmul.mubr.f32.gmra.mrb[0].mxu0 %v1699
        %v2020 = vpop.f32.mrb[0].mxu0
        %v2021 = vadd.f32 %v1876, %v2020
        %v2022 = vpop.f32.mrb[0].mxu0
        %2023 = vmatprep.mubr.f32.mxu0 0.0
        %2024 = vmatmul.mubr.f32.gmra.mrb[0].mxu0 %v1704
        %v2025 = vpop.f32.mrb[0].mxu0
        %v2026 = vadd.f32 %v1881, %v2025
        %v2027 = vpop.f32.mrb[0].mxu0
        %2028 = vmatprep.mubr.f32.mxu0 0.0
        %2029 = vmatmul.mubr.f32.gmra.mrb[0].mxu0 %v1709
        %v2030 = vpop.f32.mrb[0].mxu0
        %v2031 = vadd.f32 %v1886, %v2030
        %v2032 = vpop.f32.mrb[0].mxu0
        %2033 = vmatprep.mubr.f32.mxu0 0.0
        %2034 = vmatmul.mubr.f32.gmra.mrb[0].mxu0 %v1714
        %v2035 = vpop.f32.mrb[0].mxu0
        %v2036 = vadd.f32 %v1891, %v2035
        %v2037 = vpop.f32.mrb[0].mxu0
        %2038 = vdwg.mxu0
        %v2039 = vld [vmem:[%s14] sm:$0x1]
        %v2041 = vlaneseq
        %v2042 = vshrl.u32 %v2041, 7
        %v2043 = vsub.s32 0, %v2042
        %v2044 = vrot.slane %v2039, %v2043
        %v2046 = vadd.f32 %v1961, %v2044
        %v2047 = vadd.f32 %v1966, %v2044
        %v2048 = vadd.f32 %v1971, %v2044
        %v2049 = vadd.f32 %v1976, %v2044
        %v2050 = vadd.f32 %v1981, %v2044
        %v2051 = vadd.f32 %v1986, %v2044
        %v2052 = vadd.f32 %v1991, %v2044
        %v2053 = vadd.f32 %v1996, %v2044
        %v2054 = vadd.f32 %v2001, %v2044
        %v2055 = vadd.f32 %v2006, %v2044
        %v2056 = vadd.f32 %v2011, %v2044
        %v2057 = vadd.f32 %v2016, %v2044
        %v2058 = vadd.f32 %v2021, %v2044
        %v2059 = vadd.f32 %v2026, %v2044
        %v2060 = vadd.f32 %v2031, %v2044
        %v2061 = vadd.f32 %v2036, %v2044
        %v2062 = vmax.f32 %v2046, 0.0
        %v2063 = vmax.f32 %v2047, 0.0
        %v2064 = vmax.f32 %v2048, 0.0
        %v2065 = vmax.f32 %v2049, 0.0
        %v2066 = vmax.f32 %v2050, 0.0
        %v2067 = vmax.f32 %v2051, 0.0
        %v2068 = vmax.f32 %v2052, 0.0
        %v2069 = vmax.f32 %v2053, 0.0
        %v2070 = vmax.f32 %v2054, 0.0
        %v2071 = vmax.f32 %v2055, 0.0
        %v2072 = vmax.f32 %v2056, 0.0
        %v2073 = vmax.f32 %v2057, 0.0
        %v2074 = vmax.f32 %v2058, 0.0
        %v2075 = vmax.f32 %v2059, 0.0
        %v2076 = vmax.f32 %v2060, 0.0
        %v2077 = vmax.f32 %v2061, 0.0
        %v2078 = vld [vmem:[#allocation10] sm:$0xff]
        %v2079 = vld [vmem:[#allocation10 + $0x8] sm:$0xff]
        %v2080 = vld [vmem:[#allocation10 + $0x10] sm:$0xff]
        %v2081 = vld [vmem:[#allocation10 + $0x18] sm:$0xff]
        %v2082 = vld [vmem:[#allocation10 + $0x20] sm:$0xff]
        %v2083 = vld [vmem:[#allocation10 + $0x28] sm:$0xff]
        %v2084 = vld [vmem:[#allocation10 + $0x30] sm:$0xff]
        %v2085 = vld [vmem:[#allocation10 + $0x38] sm:$0xff]
        %v2086 = vld [vmem:[#allocation10 + $0x40] sm:$0xff]
        %v2087 = vld [vmem:[#allocation10 + $0x48] sm:$0xff]
        %v2088 = vld [vmem:[#allocation10 + $0x50] sm:$0xff]
        %v2089 = vld [vmem:[#allocation10 + $0x58] sm:$0xff]
        %v2090 = vld [vmem:[#allocation10 + $0x60] sm:$0xff]
        %v2091 = vld [vmem:[#allocation10 + $0x68] sm:$0xff]
        %v2092 = vld [vmem:[#allocation10 + $0x70] sm:$0xff]
        %v2093 = vld [vmem:[#allocation10 + $0x78] sm:$0xff]
        %v2094 = vld [vmem:[%s16] sm:$0x1]
        %v2096 = vlaneseq
        %v2097 = vshrl.u32 %v2096, 7
        %v2098 = vsub.s32 0, %v2097
        %v2099 = vrot.slane %v2094, %v2098
        %2101 = vmatprep.subr.mxu0 0.0
        %2102 = vmatpush1.msra.mxu0 %v2078
        %2103 = vmatprep.subr.mxu0 0.0
        %2104 = vmatpush1.msra.mxu0 %v2079
        %2105 = vmatprep.subr.mxu0 0.0
        %2106 = vmatpush1.msra.mxu0 %v2080
        %2107 = vmatprep.subr.mxu0 0.0
        %2108 = vmatpush1.msra.mxu0 %v2081
        %2109 = vmatprep.subr.mxu0 0.0
        %2110 = vmatpush1.msra.mxu0 %v2082
        %2111 = vmatprep.subr.mxu0 0.0
        %2112 = vmatpush1.msra.mxu0 %v2083
        %2113 = vmatprep.subr.mxu0 0.0
        %2114 = vmatpush1.msra.mxu0 %v2084
        %2115 = vmatprep.subr.mxu0 0.0
        %2116 = vmatpush1.msra.mxu0 %v2085
        %2117 = vmatprep.subr.mxu0 0.0
        %2118 = vmatpush1.msra.mxu0 %v2086
        %2119 = vmatprep.subr.mxu0 0.0
        %2120 = vmatpush1.msra.mxu0 %v2087
        %2121 = vmatprep.subr.mxu0 0.0
        %2122 = vmatpush1.msra.mxu0 %v2088
        %2123 = vmatprep.subr.mxu0 0.0
        %2124 = vmatpush1.msra.mxu0 %v2089
        %2125 = vmatprep.subr.mxu0 0.0
        %2126 = vmatpush1.msra.mxu0 %v2090
        %2127 = vmatprep.subr.mxu0 0.0
        %2128 = vmatpush1.msra.mxu0 %v2091
        %2129 = vmatprep.subr.mxu0 0.0
        %2130 = vmatpush1.msra.mxu0 %v2092
        %2131 = vmatprep.subr.mxu0 0.0
        %2132 = vmatpush1.msra.mxu0 %v2093
        %2133 = vmatprep.subr.mxu0 0.0
        %2134 = vmatpush1.msra.mxu0 0.0
        %2135 = vmatprep.subr.mxu0 0.0
        %2136 = vmatpush1.msra.mxu0 0.0
        %2137 = vmatprep.subr.mxu0 0.0
        %2138 = vmatpush1.msra.mxu0 0.0
        %2139 = vmatprep.subr.mxu0 0.0
        %2140 = vmatpush1.msra.mxu0 0.0
        %2141 = vmatprep.subr.mxu0 0.0
        %2142 = vmatpush1.msra.mxu0 0.0
        %2143 = vmatprep.subr.mxu0 0.0
        %2144 = vmatpush1.msra.mxu0 0.0
        %2145 = vmatprep.subr.mxu0 0.0
        %2146 = vmatpush1.msra.mxu0 0.0
        %2147 = vmatprep.subr.mxu0 0.0
        %2148 = vmatpush1.msra.mxu0 0.0
        %2149 = vmatprep.subr.mxu0 0.0
        %2150 = vmatpush1.msra.mxu0 0.0
        %2151 = vmatprep.subr.mxu0 0.0
        %2152 = vmatpush1.msra.mxu0 0.0
        %2153 = vmatprep.subr.mxu0 0.0
        %2154 = vmatpush1.msra.mxu0 0.0
        %2155 = vmatprep.subr.mxu0 0.0
        %2156 = vmatpush1.msra.mxu0 0.0
        %2157 = vmatprep.subr.mxu0 0.0
        %2158 = vmatpush1.msra.mxu0 0.0
        %2159 = vmatprep.subr.mxu0 0.0
        %2160 = vmatpush1.msra.mxu0 0.0
        %2161 = vmatprep.subr.mxu0 0.0
        %2162 = vmatpush1.msra.mxu0 0.0
        %2163 = vmatprep.subr.mxu0 0.0
        %2164 = vmatpush1.msra.mxu0 0.0
        %2165 = vmatprep.mubr.f32.mxu0 0.0
        %2166 = vmatmul.mubr.f32.gmra.mrb[0].mxu0 %v2062
        %v2167 = vpop.f32.mrb[0].mxu0
        %v2168 = vadd.f32 %v2099, %v2167
        %v2169 = vpop.f32.mrb[0].mxu0
        %2170 = vmatprep.mubr.f32.mxu0 0.0
        %2171 = vmatmul.mubr.f32.gmra.mrb[0].mxu0 %v2063
        %v2172 = vpop.f32.mrb[0].mxu0
        %v2173 = vadd.f32 %v2099, %v2172
        %v2174 = vpop.f32.mrb[0].mxu0
        %2175 = vmatprep.mubr.f32.mxu0 0.0
        %2176 = vmatmul.mubr.f32.gmra.mrb[0].mxu0 %v2064
        %v2177 = vpop.f32.mrb[0].mxu0
        %v2178 = vadd.f32 %v2099, %v2177
        %v2179 = vpop.f32.mrb[0].mxu0
        %2180 = vmatprep.mubr.f32.mxu0 0.0
        %2181 = vmatmul.mubr.f32.gmra.mrb[0].mxu0 %v2065
        %v2182 = vpop.f32.mrb[0].mxu0
        %v2183 = vadd.f32 %v2099, %v2182
        %v2184 = vpop.f32.mrb[0].mxu0
        %2185 = vmatprep.mubr.f32.mxu0 0.0
        %2186 = vmatmul.mubr.f32.gmra.mrb[0].mxu0 %v2066
        %v2187 = vpop.f32.mrb[0].mxu0
        %v2188 = vadd.f32 %v2099, %v2187
        %v2189 = vpop.f32.mrb[0].mxu0
        %2190 = vmatprep.mubr.f32.mxu0 0.0
        %2191 = vmatmul.mubr.f32.gmra.mrb[0].mxu0 %v2067
        %v2192 = vpop.f32.mrb[0].mxu0
        %v2193 = vadd.f32 %v2099, %v2192
        %v2194 = vpop.f32.mrb[0].mxu0
        %2195 = vmatprep.mubr.f32.mxu0 0.0
        %2196 = vmatmul.mubr.f32.gmra.mrb[0].mxu0 %v2068
        %v2197 = vpop.f32.mrb[0].mxu0
        %v2198 = vadd.f32 %v2099, %v2197
        %v2199 = vpop.f32.mrb[0].mxu0
        %2200 = vmatprep.mubr.f32.mxu0 0.0
        %2201 = vmatmul.mubr.f32.gmra.mrb[0].mxu0 %v2069
        %v2202 = vpop.f32.mrb[0].mxu0
        %v2203 = vadd.f32 %v2099, %v2202
        %v2204 = vpop.f32.mrb[0].mxu0
        %2205 = vmatprep.mubr.f32.mxu0 0.0
        %2206 = vmatmul.mubr.f32.gmra.mrb[0].mxu0 %v2070
        %v2207 = vpop.f32.mrb[0].mxu0
        %v2208 = vadd.f32 %v2099, %v2207
        %v2209 = vpop.f32.mrb[0].mxu0
        %2210 = vmatprep.mubr.f32.mxu0 0.0
        %2211 = vmatmul.mubr.f32.gmra.mrb[0].mxu0 %v2071
        %v2212 = vpop.f32.mrb[0].mxu0
        %v2213 = vadd.f32 %v2099, %v2212
        %v2214 = vpop.f32.mrb[0].mxu0
        %2215 = vmatprep.mubr.f32.mxu0 0.0
        %2216 = vmatmul.mubr.f32.gmra.mrb[0].mxu0 %v2072
        %v2217 = vpop.f32.mrb[0].mxu0
        %v2218 = vadd.f32 %v2099, %v2217
        %v2219 = vpop.f32.mrb[0].mxu0
        %2220 = vmatprep.mubr.f32.mxu0 0.0
        %2221 = vmatmul.mubr.f32.gmra.mrb[0].mxu0 %v2073
        %v2222 = vpop.f32.mrb[0].mxu0
        %v2223 = vadd.f32 %v2099, %v2222
        %v2224 = vpop.f32.mrb[0].mxu0
        %2225 = vmatprep.mubr.f32.mxu0 0.0
        %2226 = vmatmul.mubr.f32.gmra.mrb[0].mxu0 %v2074
        %v2227 = vpop.f32.mrb[0].mxu0
        %v2228 = vadd.f32 %v2099, %v2227
        %v2229 = vpop.f32.mrb[0].mxu0
        %2230 = vmatprep.mubr.f32.mxu0 0.0
        %2231 = vmatmul.mubr.f32.gmra.mrb[0].mxu0 %v2075
        %v2232 = vpop.f32.mrb[0].mxu0
        %v2233 = vadd.f32 %v2099, %v2232
        %v2234 = vpop.f32.mrb[0].mxu0
        %2235 = vmatprep.mubr.f32.mxu0 0.0
        %2236 = vmatmul.mubr.f32.gmra.mrb[0].mxu0 %v2076
        %v2237 = vpop.f32.mrb[0].mxu0
        %v2238 = vadd.f32 %v2099, %v2237
        %v2239 = vpop.f32.mrb[0].mxu0
        %2240 = vmatprep.mubr.f32.mxu0 0.0
        %2241 = vmatmul.mubr.f32.gmra.mrb[0].mxu0 %v2077
        %v2242 = vpop.f32.mrb[0].mxu0
        %v2243 = vadd.f32 %v2099, %v2242
        %v2244 = vpop.f32.mrb[0].mxu0
        %2245 = vdwg.mxu0
        %v2246 = vlaneseq
        %v2247 = vshrl.u32 %v2246, 7
        %v2248 = vadd.s32 %v2247, 8
        %v2249 = vadd.s32 %v2247, 16
        %v2250 = vadd.s32 %v2247, 24
        %v2251 = vadd.s32 %v2247, 32
        %v2252 = vadd.s32 %v2247, 40
        %v2253 = vadd.s32 %v2247, 48
        %v2254 = vadd.s32 %v2247, 56
        %v2255 = vadd.s32 %v2247, 64
        %v2256 = vadd.s32 %v2247, 72
        %v2257 = vadd.s32 %v2247, 80
        %v2258 = vadd.s32 %v2247, 88
        %v2259 = vadd.s32 %v2247, 96
        %v2260 = vadd.s32 %v2247, 104
        %v2261 = vadd.s32 %v2247, 112
        %v2262 = vadd.s32 %v2247, 120
        %s2263 = smul.u32 %s40, 128
        %v2264 = vstv %s2263
        %v2265 = vadd.s32 %v2247, %v2264
        %v2266 = vadd.s32 %v2248, %v2264
        %v2267 = vadd.s32 %v2249, %v2264
        %v2268 = vadd.s32 %v2250, %v2264
        %v2269 = vadd.s32 %v2251, %v2264
        %v2270 = vadd.s32 %v2252, %v2264
        %v2271 = vadd.s32 %v2253, %v2264
        %v2272 = vadd.s32 %v2254, %v2264
        %v2273 = vadd.s32 %v2255, %v2264
        %v2274 = vadd.s32 %v2256, %v2264
        %v2275 = vadd.s32 %v2257, %v2264
        %v2276 = vadd.s32 %v2258, %v2264
        %v2277 = vadd.s32 %v2259, %v2264
        %v2278 = vadd.s32 %v2260, %v2264
        %v2279 = vadd.s32 %v2261, %v2264
        %v2280 = vadd.s32 %v2262, %v2264
        %v2281 = vld [vmem:[%s717] sm:$0x1]
        %v2282 = vlaneseq
        %v2283 = vshrl.u32 %v2282, 7
        %v2284 = vsub.s32 0, %v2283
        %v2285 = vrot.slane %v2281, %v2284
        %vm2286 = vcmp.eq.s32.totalorder %v2265, %v2285
        %vm2287 = vcmp.eq.s32.totalorder %v2266, %v2285
        %vm2288 = vcmp.eq.s32.totalorder %v2267, %v2285
        %vm2289 = vcmp.eq.s32.totalorder %v2268, %v2285
        %vm2290 = vcmp.eq.s32.totalorder %v2269, %v2285
        %vm2291 = vcmp.eq.s32.totalorder %v2270, %v2285
        %vm2292 = vcmp.eq.s32.totalorder %v2271, %v2285
        %vm2293 = vcmp.eq.s32.totalorder %v2272, %v2285
        %vm2294 = vcmp.eq.s32.totalorder %v2273, %v2285
        %vm2295 = vcmp.eq.s32.totalorder %v2274, %v2285
        %vm2296 = vcmp.eq.s32.totalorder %v2275, %v2285
        %vm2297 = vcmp.eq.s32.totalorder %v2276, %v2285
        %vm2298 = vcmp.eq.s32.totalorder %v2277, %v2285
        %vm2299 = vcmp.eq.s32.totalorder %v2278, %v2285
        %vm2300 = vcmp.eq.s32.totalorder %v2279, %v2285
        %vm2301 = vcmp.eq.s32.totalorder %v2280, %v2285
        %v2302 = vsel %vm2286, 1, 0
        %v2303 = vsel %vm2287, 1, 0
        %v2304 = vsel %vm2288, 1, 0
        %v2305 = vsel %vm2289, 1, 0
        %v2306 = vsel %vm2290, 1, 0
        %v2307 = vsel %vm2291, 1, 0
        %v2308 = vsel %vm2292, 1, 0
        %v2309 = vsel %vm2293, 1, 0
        %v2310 = vsel %vm2294, 1, 0
        %v2311 = vsel %vm2295, 1, 0
        %v2312 = vsel %vm2296, 1, 0
        %v2313 = vsel %vm2297, 1, 0
        %v2314 = vsel %vm2298, 1, 0
        %v2315 = vsel %vm2299, 1, 0
        %v2316 = vsel %vm2300, 1, 0
        %v2317 = vsel %vm2301, 1, 0
        %v2318 = vcvt.s32.f32 %v2302
        %v2319 = vcvt.s32.f32 %v2303
        %v2320 = vcvt.s32.f32 %v2304
        %v2321 = vcvt.s32.f32 %v2305
        %v2322 = vcvt.s32.f32 %v2306
        %v2323 = vcvt.s32.f32 %v2307
        %v2324 = vcvt.s32.f32 %v2308
        %v2325 = vcvt.s32.f32 %v2309
        %v2326 = vcvt.s32.f32 %v2310
        %v2327 = vcvt.s32.f32 %v2311
        %v2328 = vcvt.s32.f32 %v2312
        %v2329 = vcvt.s32.f32 %v2313
        %v2330 = vcvt.s32.f32 %v2314
        %v2331 = vcvt.s32.f32 %v2315
        %v2332 = vcvt.s32.f32 %v2316
        %v2333 = vcvt.s32.f32 %v2317
        %v2334 = vld [vmem:[%s695] sm:$0xff]
        %v2335 = vld [vmem:[%s695 + $0x8] sm:$0xff]
        %v2336 = vld [vmem:[%s695 + $0x10] sm:$0xff]
        %v2337 = vld [vmem:[%s695 + $0x18] sm:$0xff]
        %v2338 = vld [vmem:[%s695 + $0x20] sm:$0xff]
        %v2339 = vld [vmem:[%s695 + $0x28] sm:$0xff]
        %v2340 = vld [vmem:[%s695 + $0x30] sm:$0xff]
        %v2341 = vld [vmem:[%s695 + $0x38] sm:$0xff]
        %v2342 = vld [vmem:[%s695 + $0x40] sm:$0xff]
        %v2343 = vld [vmem:[%s695 + $0x48] sm:$0xff]
        %v2344 = vld [vmem:[%s695 + $0x50] sm:$0xff]
        %v2345 = vld [vmem:[%s695 + $0x58] sm:$0xff]
        %v2346 = vld [vmem:[%s695 + $0x60] sm:$0xff]
        %v2347 = vld [vmem:[%s695 + $0x68] sm:$0xff]
        %v2348 = vld [vmem:[%s695 + $0x70] sm:$0xff]
        %v2349 = vld [vmem:[%s695 + $0x78] sm:$0xff]
        %2350 = vmatprep.subr.mxu0 0.0
        %2351 = vmatpush1.msra.mxu0 %v2168
        %2352 = vmatprep.subr.mxu0 0.0
        %2353 = vmatpush1.msra.mxu0 %v2173
        %2354 = vmatprep.subr.mxu0 0.0
        %2355 = vmatpush1.msra.mxu0 %v2178
        %2356 = vmatprep.subr.mxu0 0.0
        %2357 = vmatpush1.msra.mxu0 %v2183
        %2358 = vmatprep.subr.mxu0 0.0
        %2359 = vmatpush1.msra.mxu0 %v2188
        %2360 = vmatprep.subr.mxu0 0.0
        %2361 = vmatpush1.msra.mxu0 %v2193
        %2362 = vmatprep.subr.mxu0 0.0
        %2363 = vmatpush1.msra.mxu0 %v2198
        %2364 = vmatprep.subr.mxu0 0.0
        %2365 = vmatpush1.msra.mxu0 %v2203
        %2366 = vmatprep.subr.mxu0 0.0
        %2367 = vmatpush1.msra.mxu0 %v2208
        %2368 = vmatprep.subr.mxu0 0.0
        %2369 = vmatpush1.msra.mxu0 %v2213
        %2370 = vmatprep.subr.mxu0 0.0
        %2371 = vmatpush1.msra.mxu0 %v2218
        %2372 = vmatprep.subr.mxu0 0.0
        %2373 = vmatpush1.msra.mxu0 %v2223
        %2374 = vmatprep.subr.mxu0 0.0
        %2375 = vmatpush1.msra.mxu0 %v2228
        %2376 = vmatprep.subr.mxu0 0.0
        %2377 = vmatpush1.msra.mxu0 %v2233
        %2378 = vmatprep.subr.mxu0 0.0
        %2379 = vmatpush1.msra.mxu0 %v2238
        %2380 = vmatprep.subr.mxu0 0.0
        %2381 = vmatpush1.msra.mxu0 %v2243
        %2382 = vmatprep.subr.mxu0 0.0
        %2383 = vmatpush1.msra.mxu0 0.0
        %2384 = vmatprep.subr.mxu0 0.0
        %2385 = vmatpush1.msra.mxu0 0.0
        %2386 = vmatprep.subr.mxu0 0.0
        %2387 = vmatpush1.msra.mxu0 0.0
        %2388 = vmatprep.subr.mxu0 0.0
        %2389 = vmatpush1.msra.mxu0 0.0
        %2390 = vmatprep.subr.mxu0 0.0
        %2391 = vmatpush1.msra.mxu0 0.0
        %2392 = vmatprep.subr.mxu0 0.0
        %2393 = vmatpush1.msra.mxu0 0.0
        %2394 = vmatprep.subr.mxu0 0.0
        %2395 = vmatpush1.msra.mxu0 0.0
        %2396 = vmatprep.subr.mxu0 0.0
        %2397 = vmatpush1.msra.mxu0 0.0
        %2398 = vmatprep.subr.mxu0 0.0
        %2399 = vmatpush1.msra.mxu0 0.0
        %2400 = vmatprep.subr.mxu0 0.0
        %2401 = vmatpush1.msra.mxu0 0.0
        %2402 = vmatprep.subr.mxu0 0.0
        %2403 = vmatpush1.msra.mxu0 0.0
        %2404 = vmatprep.subr.mxu0 0.0
        %2405 = vmatpush1.msra.mxu0 0.0
        %2406 = vmatprep.subr.mxu0 0.0
        %2407 = vmatpush1.msra.mxu0 0.0
        %2408 = vmatprep.subr.mxu0 0.0
        %2409 = vmatpush1.msra.mxu0 0.0
        %2410 = vmatprep.subr.mxu0 0.0
        %2411 = vmatpush1.msra.mxu0 0.0
        %2412 = vmatprep.subr.mxu0 0.0
        %2413 = vmatpush1.msra.mxu0 0.0
        %2414 = vmatprep.mubr.f32.mxu0 0.0
        %2415 = vmatmul.mubr.f32.gmra.mrb[0].mxu0 %v2318
        %v2416 = vpop.f32.mrb[0].mxu0
        %v2417 = vadd.f32 0.0, %v2416
        %v2418 = vpop.f32.mrb[0].mxu0
        %2419 = vmatprep.mubr.f32.mxu0 0.0
        %2420 = vmatmul.mubr.f32.gmra.mrb[0].mxu0 %v2319
        %v2421 = vpop.f32.mrb[0].mxu0
        %v2422 = vadd.f32 0.0, %v2421
        %v2423 = vpop.f32.mrb[0].mxu0
        %2424 = vmatprep.mubr.f32.mxu0 0.0
        %2425 = vmatmul.mubr.f32.gmra.mrb[0].mxu0 %v2320
        %v2426 = vpop.f32.mrb[0].mxu0
        %v2427 = vadd.f32 0.0, %v2426
        %v2428 = vpop.f32.mrb[0].mxu0
        %2429 = vmatprep.mubr.f32.mxu0 0.0
        %2430 = vmatmul.mubr.f32.gmra.mrb[0].mxu0 %v2321
        %v2431 = vpop.f32.mrb[0].mxu0
        %v2432 = vadd.f32 0.0, %v2431
        %v2433 = vpop.f32.mrb[0].mxu0
        %2434 = vmatprep.mubr.f32.mxu0 0.0
        %2435 = vmatmul.mubr.f32.gmra.mrb[0].mxu0 %v2322
        %v2436 = vpop.f32.mrb[0].mxu0
        %v2437 = vadd.f32 0.0, %v2436
        %v2438 = vpop.f32.mrb[0].mxu0
        %2439 = vmatprep.mubr.f32.mxu0 0.0
        %2440 = vmatmul.mubr.f32.gmra.mrb[0].mxu0 %v2323
        %v2441 = vpop.f32.mrb[0].mxu0
        %v2442 = vadd.f32 0.0, %v2441
        %v2443 = vpop.f32.mrb[0].mxu0
        %2444 = vmatprep.mubr.f32.mxu0 0.0
        %2445 = vmatmul.mubr.f32.gmra.mrb[0].mxu0 %v2324
        %v2446 = vpop.f32.mrb[0].mxu0
        %v2447 = vadd.f32 0.0, %v2446
        %v2448 = vpop.f32.mrb[0].mxu0
        %2449 = vmatprep.mubr.f32.mxu0 0.0
        %2450 = vmatmul.mubr.f32.gmra.mrb[0].mxu0 %v2325
        %v2451 = vpop.f32.mrb[0].mxu0
        %v2452 = vadd.f32 0.0, %v2451
        %v2453 = vpop.f32.mrb[0].mxu0
        %2454 = vmatprep.mubr.f32.mxu0 0.0
        %2455 = vmatmul.mubr.f32.gmra.mrb[0].mxu0 %v2326
        %v2456 = vpop.f32.mrb[0].mxu0
        %v2457 = vadd.f32 0.0, %v2456
        %v2458 = vpop.f32.mrb[0].mxu0
        %2459 = vmatprep.mubr.f32.mxu0 0.0
        %2460 = vmatmul.mubr.f32.gmra.mrb[0].mxu0 %v2327
        %v2461 = vpop.f32.mrb[0].mxu0
        %v2462 = vadd.f32 0.0, %v2461
        %v2463 = vpop.f32.mrb[0].mxu0
        %2464 = vmatprep.mubr.f32.mxu0 0.0
        %2465 = vmatmul.mubr.f32.gmra.mrb[0].mxu0 %v2328
        %v2466 = vpop.f32.mrb[0].mxu0
        %v2467 = vadd.f32 0.0, %v2466
        %v2468 = vpop.f32.mrb[0].mxu0
        %2469 = vmatprep.mubr.f32.mxu0 0.0
        %2470 = vmatmul.mubr.f32.gmra.mrb[0].mxu0 %v2329
        %v2471 = vpop.f32.mrb[0].mxu0
        %v2472 = vadd.f32 0.0, %v2471
        %v2473 = vpop.f32.mrb[0].mxu0
        %2474 = vmatprep.mubr.f32.mxu0 0.0
        %2475 = vmatmul.mubr.f32.gmra.mrb[0].mxu0 %v2330
        %v2476 = vpop.f32.mrb[0].mxu0
        %v2477 = vadd.f32 0.0, %v2476
        %v2478 = vpop.f32.mrb[0].mxu0
        %2479 = vmatprep.mubr.f32.mxu0 0.0
        %2480 = vmatmul.mubr.f32.gmra.mrb[0].mxu0 %v2331
        %v2481 = vpop.f32.mrb[0].mxu0
        %v2482 = vadd.f32 0.0, %v2481
        %v2483 = vpop.f32.mrb[0].mxu0
        %2484 = vmatprep.mubr.f32.mxu0 0.0
        %2485 = vmatmul.mubr.f32.gmra.mrb[0].mxu0 %v2332
        %v2486 = vpop.f32.mrb[0].mxu0
        %v2487 = vadd.f32 0.0, %v2486
        %v2488 = vpop.f32.mrb[0].mxu0
        %2489 = vmatprep.mubr.f32.mxu0 0.0
        %2490 = vmatmul.mubr.f32.gmra.mrb[0].mxu0 %v2333
        %v2491 = vpop.f32.mrb[0].mxu0
        %v2492 = vadd.f32 0.0, %v2491
        %v2493 = vpop.f32.mrb[0].mxu0
        %2494 = vdwg.mxu0
        %v2495 = vadd.f32 %v2334, %v2417
        %v2496 = vadd.f32 %v2335, %v2422
        %v2497 = vadd.f32 %v2336, %v2427
        %v2498 = vadd.f32 %v2337, %v2432
        %v2499 = vadd.f32 %v2338, %v2437
        %v2500 = vadd.f32 %v2339, %v2442
        %v2501 = vadd.f32 %v2340, %v2447
        %v2502 = vadd.f32 %v2341, %v2452
        %v2503 = vadd.f32 %v2342, %v2457
        %v2504 = vadd.f32 %v2343, %v2462
        %v2505 = vadd.f32 %v2344, %v2467
        %v2506 = vadd.f32 %v2345, %v2472
        %v2507 = vadd.f32 %v2346, %v2477
        %v2508 = vadd.f32 %v2347, %v2482
        %v2509 = vadd.f32 %v2348, %v2487
        %v2510 = vadd.f32 %v2349, %v2492
        %2511 = vst [vmem:[%s695] sm:$0xff] %v2495
        %2512 = vst [vmem:[%s695 + $0x8] sm:$0xff] %v2496
        %2513 = vst [vmem:[%s695 + $0x10] sm:$0xff] %v2497
        %2514 = vst [vmem:[%s695 + $0x18] sm:$0xff] %v2498
        %2515 = vst [vmem:[%s695 + $0x20] sm:$0xff] %v2499
        %2516 = vst [vmem:[%s695 + $0x28] sm:$0xff] %v2500
        %2517 = vst [vmem:[%s695 + $0x30] sm:$0xff] %v2501
        %2518 = vst [vmem:[%s695 + $0x38] sm:$0xff] %v2502
        %2519 = vst [vmem:[%s695 + $0x40] sm:$0xff] %v2503
        %2520 = vst [vmem:[%s695 + $0x48] sm:$0xff] %v2504
        %2521 = vst [vmem:[%s695 + $0x50] sm:$0xff] %v2505
        %2522 = vst [vmem:[%s695 + $0x58] sm:$0xff] %v2506
        %2523 = vst [vmem:[%s695 + $0x60] sm:$0xff] %v2507
        %2524 = vst [vmem:[%s695 + $0x68] sm:$0xff] %v2508
        %2525 = vst [vmem:[%s695 + $0x70] sm:$0xff] %v2509
        %2526 = vst [vmem:[%s695 + $0x78] sm:$0xff] %v2510
        %s2527 = sand.u32 %s438, 1
        %s2528 = scalar_lea.sflag [#allocation4], %s2527
        %s2529 = sand.u32 %s438, 1
        %s2530 = smul.addr %s2529, 128
        %s2531 = scalar_lea.vmem [#allocation11], %s2530
        // Predicated region
        $region113: #{tpu_custom_call.1} parent=87 // pred_check
          %p2532 = pneg %p448
        $region114: #{tpu_custom_call.1} parent=87 // pred_check_branch
          %2534 = sbr.rel (%p2532) target = $region116
        $region115: #{tpu_custom_call.1} parent=87 // pred_region
          %s2535 = smul.u32 16, %s40
          %s2537 = ssub.s32 2048, 2048
          %2538 = vsyncadd %s2528, %s2537
          %s2539 = smul.addr %s2535, 128
          %s2540 = scalar_lea.hbm %s17, %s2539
          %s2541 = sshll.u32 %s2531, 4
          %s2542 = int_to_ptr.vmem [resolvable:$true] %s2541
          %2547 = dma.vmem_to_hbm [thread:$0]  %s2542, 2048, %s2540, %s2528, 128, 128, 8
        $region116: #{tpu_custom_call.1} parent=87 // pred_fallthru
          _
      $region88: #{tpu_custom_call.1} parent=5 // pred_fallthru
        _
      %p2548 = scmp.le.s32.totalorder 2, %s31
      // Predicated region
      $region117: #{tpu_custom_call.1} parent=5 // pred_check
        %p2549 = pneg %p2548
      $region118: #{tpu_custom_call.1} parent=5 // pred_check_branch
        %2551 = sbr.rel (%p2549) target = $region120
      $region119: #{tpu_custom_call.1} parent=5 // pred_region
        %s2552 = ssub.s32 %s31, 2
        // Predicated region
        $region121: #{tpu_custom_call.1} parent=119 // pred_check
          %p2553 = pneg %p454
        $region122: #{tpu_custom_call.1} parent=119 // pred_check_branch
          %2555 = sbr.rel (%p2553) target = $region124
        $region123: #{tpu_custom_call.1} parent=119 // pred_region
          %s2556 = sand.u32 %s439, 1
          %s2557 = scalar_lea.sflag [#allocation4], %s2556
          %s2558 = sand.u32 %s439, 1
          %s2559 = smul.addr %s2558, 128
          %s2560 = scalar_lea.vmem [#allocation11], %s2559
          %2561 = dma.done %s2557, 2048
        $region124: #{tpu_custom_call.1} parent=119 // pred_fallthru
          _
      $region120: #{tpu_custom_call.1} parent=5 // pred_fallthru
        _
    $region6: #{tpu_custom_call.1} parent=1 // loop_footer
      %s35 = sadd.s32 1, %s31
    $region7: #{tpu_custom_call.1} parent=1 // loop_footer_branch
      %30 = sbr.rel target = $region3
    $region8: #{tpu_custom_call.1} parent=1 // loop_exit
      _
    %2562 = vsyncpa [#allocation3], 1
    %s2563 = scalar_lea.sflag [#allocation3], 1
    %2564 = vsyncpa %s2563, 1
    %2565 = vsyncpa [#allocation6], 1
    %2566 = vsyncpa [#allocation9], 1
    %2567 = vsyncpa [#allocation4], 1
    %s2568 = scalar_lea.sflag [#allocation4], 1
    %2569 = vsyncpa %s2568, 1

</llo_original>
